<compile_context>
chip_gen: v5e
topology: v5e:2x2
jax: 0.10.0
libtpu: 0.0.40
codegen_flags: <defaults>
</compile_context>

<pallas_src>
import functools

import jax
import jax.numpy as jnp
from jax import lax
from jax.experimental import pallas as pl
from jax.experimental.pallas import tpu as pltpu

LANE = 128
SUBLANE = 8   # f32 sublane tile; per-timestep batch rows padded to this


def _round_up(x, m):
    return (x + m - 1) // m * m


# ----------------------------------------------------------------------------
# Fused kernel
# ----------------------------------------------------------------------------
def _bilstm_sentiment_kernel(x_ref, wih_ref, whh_ref, wlab_ref, bias_ref,
                             out_ref, xg_ref, *, bp):
    """Fused BiLSTM sentiment forward.

    x_ref    : (T*BP, D)     bf16  time-major input, BP rows/step (zero-padded rows)
    wih_ref  : (D, 8*HP)     bf16  [W_ih_fwd | W_ih_bwd], gate blocks lane-aligned
    whh_ref  : (HP, 4*HP)    bf16  forward W_hh, gate blocks lane-aligned
    wlab_ref : (2*HP, C)     bf16  hidden2label weight (rows 0:H fwd, HP:HP+H bwd)
    bias_ref : (2, 8*HP)     f32   row0 = gate biases (fwd|bwd), row1[:C] = label bias
    out_ref  : (B, C)        f32   log-probs
    xg_ref   : (T*BP, 8*HP)  f32   VMEM scratch: hoisted input projection
    """
    BP = bp
    T = x_ref.shape[0] // BP
    HP = whh_ref.shape[0]
    C = wlab_ref.shape[1]
    B = out_ref.shape[0]

    def gate_update(gates, c):
        # gates: (BP, 4*HP) f32; PyTorch gate order i, f, g, o; each gate block
        # sits at a lane-aligned 128-multiple offset -> full-vreg slices only.
        i = jax.nn.sigmoid(gates[:, 0 * HP:1 * HP])
        f = jax.nn.sigmoid(gates[:, 1 * HP:2 * HP])
        g = jnp.tanh(gates[:, 2 * HP:3 * HP])
        o = jax.nn.sigmoid(gates[:, 3 * HP:4 * HP])
        c_new = f * c + i * g
        h_new = o * jnp.tanh(c_new)
        return h_new, c_new

    # Hoisted input projection for BOTH directions and ALL timesteps in one
    # bf16 MXU matmul (f32 accumulation), materialized into VMEM scratch so the
    # recurrence does cheap aligned per-step loads instead of holding a large
    # live value across the unrolled steps.
    xg_ref[...] = (jnp.dot(x_ref[...], wih_ref[...],
                           preferred_element_type=jnp.float32)
                   + bias_ref[0:1, :])

    # ---- forward recurrence (serial critical path) ---------------------------
    h0 = jnp.zeros((BP, HP), jnp.float32)
    c0 = jnp.zeros((BP, HP), jnp.float32)

    def step(t, carry):
        h, c = carry
        row = pl.multiple_of(t * BP, BP)
        xg_t = xg_ref[pl.ds(row, BP), :4 * HP]          # sublane+lane aligned
        gates = xg_t + jnp.dot(h.astype(jnp.bfloat16), whh_ref[...],
                               preferred_element_type=jnp.float32)
        return gate_update(gates, c)

    # TODO(synk): for very long sequences keep xg in HBM and double-buffer it.
    h_fwd_last, _ = lax.fori_loop(0, T, step, (h0, c0), unroll=True)

    # ---- reverse direction: lstm_out[-1][:, H:] is the reverse LSTM's state
    # after processing x[T-1] alone from zeros -> exactly one gate update using
    # the reverse half of the already-computed projection (no extra matmul).
    gates_b = xg_ref[(T - 1) * BP:T * BP, 4 * HP:8 * HP]
    h_bwd_first, _ = gate_update(gates_b, jnp.zeros((BP, HP), jnp.float32))

    # ---- hidden2label + log_softmax(dim=1) ------------------------------------
    logits = (jnp.dot(h_fwd_last.astype(jnp.bfloat16), wlab_ref[:HP, :],
                      preferred_element_type=jnp.float32)
              + jnp.dot(h_bwd_first.astype(jnp.bfloat16), wlab_ref[HP:, :],
                        preferred_element_type=jnp.float32)
              + bias_ref[1:2, :C])                                   # (BP, C)
    m = jnp.max(logits, axis=-1, keepdims=True)
    lse = m + jnp.log(jnp.sum(jnp.exp(logits - m), axis=-1, keepdims=True))
    out_ref[...] = (logits - lse)[:B, :]


# ----------------------------------------------------------------------------
# One-time weight re-layout (cache the result; do NOT redo per forward call)
# ----------------------------------------------------------------------------
def _pad_gate_cols(w, hidden, hidden_pad):
    """(..., 4*hidden) PyTorch-order (i,f,g,o) gate matrix -> (..., 4*hidden_pad)
    with each gate block at lane-aligned offset g*hidden_pad, zeros elsewhere
    (padded lanes provably stay exactly 0 through the recurrence)."""
    pads = [(0, 0)] * (w.ndim - 1) + [(0, hidden_pad - hidden)]
    return jnp.concatenate(
        [jnp.pad(w[..., g * hidden:(g + 1) * hidden], pads) for g in range(4)],
        axis=-1)


def prepare_params(params, *, hidden_dim):
    H = hidden_dim
    HP = _round_up(H, LANE)
    f32, bf16 = jnp.float32, jnp.bfloat16

    w_ih_f, w_hh_f, b_ih_f, b_hh_f = params["lstm_fwd"]
    w_ih_b, _w_hh_b_unused, b_ih_b, b_hh_b = params["lstm_bwd"]
    w_lab, b_lab = params["hidden2label"]                  # (C, 2H), (C,)
    C = w_lab.shape[0]

    # Input-side weights for BOTH directions fused into one (D, 8*HP) operand.
    wih_f_p = _pad_gate_cols(w_ih_f.T.astype(f32), H, HP)             # (D, 4*HP)
    wih_b_p = _pad_gate_cols(w_ih_b.T.astype(f32), H, HP)             # (D, 4*HP)
    wih_cat = jnp.concatenate([wih_f_p, wih_b_p], axis=-1).astype(bf16)

    whh_f_p = jnp.pad(_pad_gate_cols(w_hh_f.T.astype(f32), H, HP),
                      ((0, HP - H), (0, 0))).astype(bf16)             # (HP, 4*HP)

    # Gate biases (fwd | bwd) + label bias packed into ONE small f32 operand.
    b_f_p = _pad_gate_cols((b_ih_f + b_hh_f).reshape(1, 4 * H).astype(f32), H, HP)
    b_b_p = _pad_gate_cols((b_ih_b + b_hh_b).reshape(1, 4 * H).astype(f32), H, HP)
    bias_pack = jnp.zeros((2, 8 * HP), f32)
    bias_pack = bias_pack.at[0:1, :].set(jnp.concatenate([b_f_p, b_b_p], axis=-1))
    bias_pack = bias_pack.at[1, :C].set(b_lab.astype(f32))

    # hidden2label: (C, 2H) -> (2*HP, C); fwd rows at [0:H], bwd rows at [HP:HP+H].
    w_lab_t = w_lab.T.astype(f32)                                     # (2H, C)
    wlab_p = jnp.zeros((2 * HP, C), f32)
    wlab_p = wlab_p.at[0:H, :].set(w_lab_t[0:H, :])
    wlab_p = wlab_p.at[HP:HP + H, :].set(w_lab_t[H:2 * H, :])
    wlab_p = wlab_p.astype(bf16)

    return {"wih": wih_cat, "whh": whh_f_p, "wlab": wlab_p, "bias": bias_pack}


# ----------------------------------------------------------------------------
# Forward wrapper (jitted; takes pre-laid-out weights)
# ----------------------------------------------------------------------------
@functools.partial(jax.jit, static_argnames=("batch_size",))
def bilstm_sentiment_forward(sentence, prepared, *, batch_size):
    T = sentence.shape[0]
    x = sentence.reshape(T, batch_size, -1)        # == sentence.view(T, B, -1)
    B, D = batch_size, x.shape[-1]
    BP = SUBLANE
    HP = prepared["whh"].shape[0]
    C = prepared["wlab"].shape[1]

    # Tile-aligned bf16 time-major input: BP rows per timestep, real rows first.
    x_pad = jnp.zeros((T, BP, D), jnp.bfloat16).at[:, :B, :].set(
        x.astype(jnp.bfloat16))
    x2d = x_pad.reshape(T * BP, D)

    kernel = functools.partial(_bilstm_sentiment_kernel, bp=BP)
    vmem = pl.BlockSpec(memory_space=pltpu.MemorySpace.VMEM)
    return pl.pallas_call(
        kernel,
        out_shape=jax.ShapeDtypeStruct((B, C), jnp.float32),
        in_specs=[vmem, vmem, vmem, vmem, vmem],
        out_specs=vmem,
        scratch_shapes=[pltpu.VMEM((T * BP, 8 * HP), jnp.float32)],
    )(x2d, prepared["wih"], prepared["whh"], prepared["wlab"], prepared["bias"])


# ----------------------------------------------------------------------------
# PyTorch-style parameter init (uniform(-1/sqrt(fan)), gate order i,f,g,o)
# ----------------------------------------------------------------------------
def init_params(key, embedding_dim, hidden_dim, label_size):
    H = hidden_dim
    k = 1.0 / (H ** 0.5)

    def lstm_direction(key):
        k1, k2, k3, k4 = jax.random.split(key, 4)
        w_ih = jax.random.uniform(k1, (4 * H, embedding_dim), jnp.float32, -k, k)
        w_hh = jax.random.uniform(k2, (4 * H, H), jnp.float32, -k, k)
        b_ih = jax.random.uniform(k3, (4 * H,), jnp.float32, -k, k)
        b_hh = jax.random.uniform(k4, (4 * H,), jnp.float32, -k, k)
        return (w_ih, w_hh, b_ih, b_hh)

    kf, kb, kl = jax.random.split(key, 3)
    kw, kbias = jax.random.split(kl)
    bound = 1.0 / ((2 * H) ** 0.5)
    w_lab = jax.random.uniform(kw, (label_size, 2 * H), jnp.float32, -bound, bound)
    b_lab = jax.random.uniform(kbias, (label_size,), jnp.float32, -bound, bound)
    return {"lstm_fwd": lstm_direction(kf),
            "lstm_bwd": lstm_direction(kb),
            "hidden2label": (w_lab, b_lab)}


# ----------------------------------------------------------------------------
# Plain-JAX f32 reference (FULL bidirectional recurrence) for validation.
# ----------------------------------------------------------------------------
def _reference_forward(sentence, params, *, hidden_dim, batch_size):
    T = sentence.shape[0]
    x = sentence.reshape(T, batch_size, -1)
    H, B = hidden_dim, batch_size
    hi = lax.Precision.HIGHEST

    def cell(w_ih, w_hh, b_ih, b_hh, x_t, h, c):
        gates = (jnp.dot(x_t, w_ih.T, precision=hi)
                 + jnp.dot(h, w_hh.T, precision=hi) + b_ih + b_hh)
        i = jax.nn.sigmoid(gates[:, 0 * H:1 * H])
        f = jax.nn.sigmoid(gates[:, 1 * H:2 * H])
        g = jnp.tanh(gates[:, 2 * H:3 * H])
        o = jax.nn.sigmoid(gates[:, 3 * H:4 * H])
        c = f * c + i * g
        h = o * jnp.tanh(c)
        return h, c

    h = jnp.zeros((B, H)); c = jnp.zeros((B, H))
    out_f = []
    for t in range(T):
        h, c = cell(*params["lstm_fwd"], x[t], h, c)
        out_f.append(h)
    h = jnp.zeros((B, H)); c = jnp.zeros((B, H))
    out_b = [None] * T
    for t in range(T - 1, -1, -1):
        h, c = cell(*params["lstm_bwd"], x[t], h, c)
        out_b[t] = h
    feats = jnp.concatenate([out_f[-1], out_b[-1]], axis=-1)   # lstm_out[-1]
    w_lab, b_lab = params["hidden2label"]
    y = jnp.dot(feats, w_lab.T, precision=hi) + b_lab
    return jax.nn.log_softmax(y, axis=-1)


if __name__ == "__main__":
    seq_len = 8
    batch_size = 2
    embedding_dim = 16
    hidden_dim = 32
    label_size = 5

    key = jax.random.PRNGKey(0)
    k_in, k_par = jax.random.split(key)
    sentence = jax.random.normal(k_in, (seq_len, batch_size, embedding_dim),
                                 jnp.float32)
    params = init_params(k_par, embedding_dim, hidden_dim, label_size)

    # Weight re-layout done ONCE (cached), outside the inference path.
    prepared = jax.tree_util.tree_map(
        jax.block_until_ready, prepare_params(params, hidden_dim=hidden_dim))

    out = bilstm_sentiment_forward(sentence, prepared, batch_size=batch_size)
    jax.block_until_ready(out)

    assert out.shape == (batch_size, label_size)
    # log_softmax rows must exponentiate-sum to ~1.
    assert jnp.allclose(jnp.sum(jnp.exp(out), axis=-1), 1.0, atol=1e-3)

    # Cross-check against a plain-JAX f32 reference running the FULL
    # bidirectional recurrence (validates gate math, lane/batch padding, the
    # one-step reverse shortcut, and bf16-operand accuracy).
    ref = _reference_forward(sentence, params, hidden_dim=hidden_dim,
                             batch_size=batch_size)
    assert jnp.allclose(out, ref, atol=5e-2, rtol=5e-2), float(
        jnp.max(jnp.abs(out - ref)))
    print("KERNEL_OK")
</pallas_src>

<mosaic_0001>
module attributes {stable_mosaic.version = 11 : i64} {
  func.func @_bilstm_sentiment_kernel(%arg0: memref<64x16xbf16, #tpu.memory_space<vmem>>, %arg1: memref<16x1024xbf16, #tpu.memory_space<vmem>>, %arg2: memref<128x512xbf16, #tpu.memory_space<vmem>>, %arg3: memref<256x5xbf16, #tpu.memory_space<vmem>>, %arg4: memref<2x1024xf32, #tpu.memory_space<vmem>>, %arg5: memref<2x5xf32, #tpu.memory_space<vmem>>, %arg6: memref<64x1024xf32, #tpu.memory_space<vmem>>) attributes {dimension_semantics = [], scalar_prefetch = 0 : i64, scratch_operands = 1 : i64, tpu.core_type = #tpu.core_type<tc>} {
    %c0 = arith.constant 0 : index
    %c0_0 = arith.constant 0 : index
    %0 = vector.load %arg0[%c0, %c0_0] : memref<64x16xbf16, #tpu.memory_space<vmem>>, vector<64x16xbf16>
    %c0_1 = arith.constant 0 : index
    %c0_2 = arith.constant 0 : index
    %1 = vector.load %arg1[%c0_1, %c0_2] : memref<16x1024xbf16, #tpu.memory_space<vmem>>, vector<16x1024xbf16>
    %cst = arith.constant dense<0.000000e+00> : vector<64x1024xf32>
    %2 = tpu.matmul %0, %1, %cst {dimension_numbers = #tpu.dot_dimension_numbers<[1], [0], [0], [1], [0, 0, 1, 1], [], []>} : vector<64x16xbf16>, vector<16x1024xbf16>, vector<64x1024xf32> -> vector<64x1024xf32>
    %c0_3 = arith.constant 0 : index
    %c0_4 = arith.constant 0 : index
    %3 = vector.load %arg4[%c0_3, %c0_4] : memref<2x1024xf32, #tpu.memory_space<vmem>>, vector<1x1024xf32>
    %4 = vector.broadcast %3 : vector<1x1024xf32> to vector<64x1024xf32>
    %5 = arith.addf %2, %4 : vector<64x1024xf32>
    %c0_5 = arith.constant 0 : index
    %c0_6 = arith.constant 0 : index
    %6 = vector.load %arg6[%c0_5, %c0_6] : memref<64x1024xf32, #tpu.memory_space<vmem>>, vector<64x1024xf32>
    tpu.vector_store %arg6[%c0_5, %c0_6], %5 {strides = array<i32>} : memref<64x1024xf32, #tpu.memory_space<vmem>>, vector<64x1024xf32>,
    %cst_7 = arith.constant 0.000000e+00 : f32
    %7 = vector.broadcast %cst_7 : f32 to vector<8x128xf32>
    %cst_8 = arith.constant 0.000000e+00 : f32
    %8 = vector.broadcast %cst_8 : f32 to vector<8x128xf32>
    %c0_i32 = arith.constant 0 : i32
    %c8_i32 = arith.constant 8 : i32
    %9 = arith.muli %c0_i32, %c8_i32 : i32
    %10 = tpu.assume_multiple %9, 8 : i32
    %11 = arith.index_cast %10 : i32 to index
    %c0_9 = arith.constant 0 : index
    %12 = vector.load %arg6[%11, %c0_9] : memref<64x1024xf32, #tpu.memory_space<vmem>>, vector<8x512xf32>
    %13 = arith.truncf %7 : vector<8x128xf32> to vector<8x128xbf16>
    %c0_10 = arith.constant 0 : index
    %c0_11 = arith.constant 0 : index
    %14 = vector.load %arg2[%c0_10, %c0_11] : memref<128x512xbf16, #tpu.memory_space<vmem>>, vector<128x512xbf16>
    %cst_12 = arith.constant dense<0.000000e+00> : vector<8x512xf32>
    %15 = tpu.matmul %13, %14, %cst_12 {dimension_numbers = #tpu.dot_dimension_numbers<[1], [0], [0], [1], [0, 0, 1, 1], [], []>} : vector<8x128xbf16>, vector<128x512xbf16>, vector<8x512xf32> -> vector<8x512xf32>
    %16 = arith.addf %12, %15 : vector<8x512xf32>
    %17 = vector.extract_strided_slice %16 {offsets = [0, 0], sizes = [8, 128], strides = [1, 1]} : vector<8x512xf32> to vector<8x128xf32>
    %18 = arith.negf %17 : vector<8x128xf32>
    %19 = math.exp %18 : vector<8x128xf32>
    %cst_13 = arith.constant 1.000000e+00 : f32
    %20 = vector.broadcast %cst_13 : f32 to vector<8x128xf32>
    %21 = arith.addf %20, %19 : vector<8x128xf32>
    %22 = arith.divf %20, %21 : vector<8x128xf32>
    %23 = vector.extract_strided_slice %16 {offsets = [0, 128], sizes = [8, 128], strides = [1, 1]} : vector<8x512xf32> to vector<8x128xf32>
    %24 = arith.negf %23 : vector<8x128xf32>
    %25 = math.exp %24 : vector<8x128xf32>
    %cst_14 = arith.constant 1.000000e+00 : f32
    %26 = vector.broadcast %cst_14 : f32 to vector<8x128xf32>
    %27 = arith.addf %26, %25 : vector<8x128xf32>
    %28 = arith.divf %26, %27 : vector<8x128xf32>
    %29 = vector.extract_strided_slice %16 {offsets = [0, 256], sizes = [8, 128], strides = [1, 1]} : vector<8x512xf32> to vector<8x128xf32>
    %30 = math.tanh %29 : vector<8x128xf32>
    %31 = vector.extract_strided_slice %16 {offsets = [0, 384], sizes = [8, 128], strides = [1, 1]} : vector<8x512xf32> to vector<8x128xf32>
    %32 = arith.negf %31 : vector<8x128xf32>
    %33 = math.exp %32 : vector<8x128xf32>
    %cst_15 = arith.constant 1.000000e+00 : f32
    %34 = vector.broadcast %cst_15 : f32 to vector<8x128xf32>
    %35 = arith.addf %34, %33 : vector<8x128xf32>
    %36 = arith.divf %34, %35 : vector<8x128xf32>
    %37 = arith.mulf %28, %8 : vector<8x128xf32>
    %38 = arith.mulf %22, %30 : vector<8x128xf32>
    %39 = arith.addf %37, %38 : vector<8x128xf32>
    %40 = math.tanh %39 : vector<8x128xf32>
    %41 = arith.mulf %36, %40 : vector<8x128xf32>
    %c1_i32 = arith.constant 1 : i32
    %c8_i32_16 = arith.constant 8 : i32
    %42 = arith.muli %c1_i32, %c8_i32_16 : i32
    %43 = tpu.assume_multiple %42, 8 : i32
    %44 = arith.index_cast %43 : i32 to index
    %c0_17 = arith.constant 0 : index
    %45 = vector.load %arg6[%44, %c0_17] : memref<64x1024xf32, #tpu.memory_space<vmem>>, vector<8x512xf32>
    %46 = arith.truncf %41 : vector<8x128xf32> to vector<8x128xbf16>
    %c0_18 = arith.constant 0 : index
    %c0_19 = arith.constant 0 : index
    %47 = vector.load %arg2[%c0_18, %c0_19] : memref<128x512xbf16, #tpu.memory_space<vmem>>, vector<128x512xbf16>
    %cst_20 = arith.constant dense<0.000000e+00> : vector<8x512xf32>
    %48 = tpu.matmul %46, %47, %cst_20 {dimension_numbers = #tpu.dot_dimension_numbers<[1], [0], [0], [1], [0, 0, 1, 1], [], []>} : vector<8x128xbf16>, vector<128x512xbf16>, vector<8x512xf32> -> vector<8x512xf32>
    %49 = arith.addf %45, %48 : vector<8x512xf32>
    %50 = vector.extract_strided_slice %49 {offsets = [0, 0], sizes = [8, 128], strides = [1, 1]} : vector<8x512xf32> to vector<8x128xf32>
    %51 = arith.negf %50 : vector<8x128xf32>
    %52 = math.exp %51 : vector<8x128xf32>
    %cst_21 = arith.constant 1.000000e+00 : f32
    %53 = vector.broadcast %cst_21 : f32 to vector<8x128xf32>
    %54 = arith.addf %53, %52 : vector<8x128xf32>
    %55 = arith.divf %53, %54 : vector<8x128xf32>
    %56 = vector.extract_strided_slice %49 {offsets = [0, 128], sizes = [8, 128], strides = [1, 1]} : vector<8x512xf32> to vector<8x128xf32>
    %57 = arith.negf %56 : vector<8x128xf32>
    %58 = math.exp %57 : vector<8x128xf32>
    %cst_22 = arith.constant 1.000000e+00 : f32
    %59 = vector.broadcast %cst_22 : f32 to vector<8x128xf32>
    %60 = arith.addf %59, %58 : vector<8x128xf32>
    %61 = arith.divf %59, %60 : vector<8x128xf32>
    %62 = vector.extract_strided_slice %49 {offsets = [0, 256], sizes = [8, 128], strides = [1, 1]} : vector<8x512xf32> to vector<8x128xf32>
    %63 = math.tanh %62 : vector<8x128xf32>
    %64 = vector.extract_strided_slice %49 {offsets = [0, 384], sizes = [8, 128], strides = [1, 1]} : vector<8x512xf32> to vector<8x128xf32>
    %65 = arith.negf %64 : vector<8x128xf32>
    %66 = math.exp %65 : vector<8x128xf32>
    %cst_23 = arith.constant 1.000000e+00 : f32
    %67 = vector.broadcast %cst_23 : f32 to vector<8x128xf32>
    %68 = arith.addf %67, %66 : vector<8x128xf32>
    %69 = arith.divf %67, %68 : vector<8x128xf32>
    %70 = arith.mulf %61, %39 : vector<8x128xf32>
    %71 = arith.mulf %55, %63 : vector<8x128xf32>
    %72 = arith.addf %70, %71 : vector<8x128xf32>
    %73 = math.tanh %72 : vector<8x128xf32>
    %74 = arith.mulf %69, %73 : vector<8x128xf32>
    %c2_i32 = arith.constant 2 : i32
    %c8_i32_24 = arith.constant 8 : i32
    %75 = arith.muli %c2_i32, %c8_i32_24 : i32
    %76 = tpu.assume_multiple %75, 8 : i32
    %77 = arith.index_cast %76 : i32 to index
    %c0_25 = arith.constant 0 : index
    %78 = vector.load %arg6[%77, %c0_25] : memref<64x1024xf32, #tpu.memory_space<vmem>>, vector<8x512xf32>
    %79 = arith.truncf %74 : vector<8x128xf32> to vector<8x128xbf16>
    %c0_26 = arith.constant 0 : index
    %c0_27 = arith.constant 0 : index
    %80 = vector.load %arg2[%c0_26, %c0_27] : memref<128x512xbf16, #tpu.memory_space<vmem>>, vector<128x512xbf16>
    %cst_28 = arith.constant dense<0.000000e+00> : vector<8x512xf32>
    %81 = tpu.matmul %79, %80, %cst_28 {dimension_numbers = #tpu.dot_dimension_numbers<[1], [0], [0], [1], [0, 0, 1, 1], [], []>} : vector<8x128xbf16>, vector<128x512xbf16>, vector<8x512xf32> -> vector<8x512xf32>
    %82 = arith.addf %78, %81 : vector<8x512xf32>
    %83 = vector.extract_strided_slice %82 {offsets = [0, 0], sizes = [8, 128], strides = [1, 1]} : vector<8x512xf32> to vector<8x128xf32>
    %84 = arith.negf %83 : vector<8x128xf32>
    %85 = math.exp %84 : vector<8x128xf32>
    %cst_29 = arith.constant 1.000000e+00 : f32
    %86 = vector.broadcast %cst_29 : f32 to vector<8x128xf32>
    %87 = arith.addf %86, %85 : vector<8x128xf32>
    %88 = arith.divf %86, %87 : vector<8x128xf32>
    %89 = vector.extract_strided_slice %82 {offsets = [0, 128], sizes = [8, 128], strides = [1, 1]} : vector<8x512xf32> to vector<8x128xf32>
    %90 = arith.negf %89 : vector<8x128xf32>
    %91 = math.exp %90 : vector<8x128xf32>
    %cst_30 = arith.constant 1.000000e+00 : f32
    %92 = vector.broadcast %cst_30 : f32 to vector<8x128xf32>
    %93 = arith.addf %92, %91 : vector<8x128xf32>
    %94 = arith.divf %92, %93 : vector<8x128xf32>
    %95 = vector.extract_strided_slice %82 {offsets = [0, 256], sizes = [8, 128], strides = [1, 1]} : vector<8x512xf32> to vector<8x128xf32>
    %96 = math.tanh %95 : vector<8x128xf32>
    %97 = vector.extract_strided_slice %82 {offsets = [0, 384], sizes = [8, 128], strides = [1, 1]} : vector<8x512xf32> to vector<8x128xf32>
    %98 = arith.negf %97 : vector<8x128xf32>
    %99 = math.exp %98 : vector<8x128xf32>
    %cst_31 = arith.constant 1.000000e+00 : f32
    %100 = vector.broadcast %cst_31 : f32 to vector<8x128xf32>
    %101 = arith.addf %100, %99 : vector<8x128xf32>
    %102 = arith.divf %100, %101 : vector<8x128xf32>
    %103 = arith.mulf %94, %72 : vector<8x128xf32>
    %104 = arith.mulf %88, %96 : vector<8x128xf32>
    %105 = arith.addf %103, %104 : vector<8x128xf32>
    %106 = math.tanh %105 : vector<8x128xf32>
    %107 = arith.mulf %102, %106 : vector<8x128xf32>
    %c3_i32 = arith.constant 3 : i32
    %c8_i32_32 = arith.constant 8 : i32
    %108 = arith.muli %c3_i32, %c8_i32_32 : i32
    %109 = tpu.assume_multiple %108, 8 : i32
    %110 = arith.index_cast %109 : i32 to index
    %c0_33 = arith.constant 0 : index
    %111 = vector.load %arg6[%110, %c0_33] : memref<64x1024xf32, #tpu.memory_space<vmem>>, vector<8x512xf32>
    %112 = arith.truncf %107 : vector<8x128xf32> to vector<8x128xbf16>
    %c0_34 = arith.constant 0 : index
    %c0_35 = arith.constant 0 : index
    %113 = vector.load %arg2[%c0_34, %c0_35] : memref<128x512xbf16, #tpu.memory_space<vmem>>, vector<128x512xbf16>
    %cst_36 = arith.constant dense<0.000000e+00> : vector<8x512xf32>
    %114 = tpu.matmul %112, %113, %cst_36 {dimension_numbers = #tpu.dot_dimension_numbers<[1], [0], [0], [1], [0, 0, 1, 1], [], []>} : vector<8x128xbf16>, vector<128x512xbf16>, vector<8x512xf32> -> vector<8x512xf32>
    %115 = arith.addf %111, %114 : vector<8x512xf32>
    %116 = vector.extract_strided_slice %115 {offsets = [0, 0], sizes = [8, 128], strides = [1, 1]} : vector<8x512xf32> to vector<8x128xf32>
    %117 = arith.negf %116 : vector<8x128xf32>
    %118 = math.exp %117 : vector<8x128xf32>
    %cst_37 = arith.constant 1.000000e+00 : f32
    %119 = vector.broadcast %cst_37 : f32 to vector<8x128xf32>
    %120 = arith.addf %119, %118 : vector<8x128xf32>
    %121 = arith.divf %119, %120 : vector<8x128xf32>
    %122 = vector.extract_strided_slice %115 {offsets = [0, 128], sizes = [8, 128], strides = [1, 1]} : vector<8x512xf32> to vector<8x128xf32>
    %123 = arith.negf %122 : vector<8x128xf32>
    %124 = math.exp %123 : vector<8x128xf32>
    %cst_38 = arith.constant 1.000000e+00 : f32
    %125 = vector.broadcast %cst_38 : f32 to vector<8x128xf32>
    %126 = arith.addf %125, %124 : vector<8x128xf32>
    %127 = arith.divf %125, %126 : vector<8x128xf32>
    %128 = vector.extract_strided_slice %115 {offsets = [0, 256], sizes = [8, 128], strides = [1, 1]} : vector<8x512xf32> to vector<8x128xf32>
    %129 = math.tanh %128 : vector<8x128xf32>
    %130 = vector.extract_strided_slice %115 {offsets = [0, 384], sizes = [8, 128], strides = [1, 1]} : vector<8x512xf32> to vector<8x128xf32>
    %131 = arith.negf %130 : vector<8x128xf32>
    %132 = math.exp %131 : vector<8x128xf32>
    %cst_39 = arith.constant 1.000000e+00 : f32
    %133 = vector.broadcast %cst_39 : f32 to vector<8x128xf32>
    %134 = arith.addf %133, %132 : vector<8x128xf32>
    %135 = arith.divf %133, %134 : vector<8x128xf32>
    %136 = arith.mulf %127, %105 : vector<8x128xf32>
    %137 = arith.mulf %121, %129 : vector<8x128xf32>
    %138 = arith.addf %136, %137 : vector<8x128xf32>
    %139 = math.tanh %138 : vector<8x128xf32>
    %140 = arith.mulf %135, %139 : vector<8x128xf32>
    %c4_i32 = arith.constant 4 : i32
    %c8_i32_40 = arith.constant 8 : i32
    %141 = arith.muli %c4_i32, %c8_i32_40 : i32
    %142 = tpu.assume_multiple %141, 8 : i32
    %143 = arith.index_cast %142 : i32 to index
    %c0_41 = arith.constant 0 : index
    %144 = vector.load %arg6[%143, %c0_41] : memref<64x1024xf32, #tpu.memory_space<vmem>>, vector<8x512xf32>
    %145 = arith.truncf %140 : vector<8x128xf32> to vector<8x128xbf16>
    %c0_42 = arith.constant 0 : index
    %c0_43 = arith.constant 0 : index
    %146 = vector.load %arg2[%c0_42, %c0_43] : memref<128x512xbf16, #tpu.memory_space<vmem>>, vector<128x512xbf16>
    %cst_44 = arith.constant dense<0.000000e+00> : vector<8x512xf32>
    %147 = tpu.matmul %145, %146, %cst_44 {dimension_numbers = #tpu.dot_dimension_numbers<[1], [0], [0], [1], [0, 0, 1, 1], [], []>} : vector<8x128xbf16>, vector<128x512xbf16>, vector<8x512xf32> -> vector<8x512xf32>
    %148 = arith.addf %144, %147 : vector<8x512xf32>
    %149 = vector.extract_strided_slice %148 {offsets = [0, 0], sizes = [8, 128], strides = [1, 1]} : vector<8x512xf32> to vector<8x128xf32>
    %150 = arith.negf %149 : vector<8x128xf32>
    %151 = math.exp %150 : vector<8x128xf32>
    %cst_45 = arith.constant 1.000000e+00 : f32
    %152 = vector.broadcast %cst_45 : f32 to vector<8x128xf32>
    %153 = arith.addf %152, %151 : vector<8x128xf32>
    %154 = arith.divf %152, %153 : vector<8x128xf32>
    %155 = vector.extract_strided_slice %148 {offsets = [0, 128], sizes = [8, 128], strides = [1, 1]} : vector<8x512xf32> to vector<8x128xf32>
    %156 = arith.negf %155 : vector<8x128xf32>
    %157 = math.exp %156 : vector<8x128xf32>
    %cst_46 = arith.constant 1.000000e+00 : f32
    %158 = vector.broadcast %cst_46 : f32 to vector<8x128xf32>
    %159 = arith.addf %158, %157 : vector<8x128xf32>
    %160 = arith.divf %158, %159 : vector<8x128xf32>
    %161 = vector.extract_strided_slice %148 {offsets = [0, 256], sizes = [8, 128], strides = [1, 1]} : vector<8x512xf32> to vector<8x128xf32>
    %162 = math.tanh %161 : vector<8x128xf32>
    %163 = vector.extract_strided_slice %148 {offsets = [0, 384], sizes = [8, 128], strides = [1, 1]} : vector<8x512xf32> to vector<8x128xf32>
    %164 = arith.negf %163 : vector<8x128xf32>
    %165 = math.exp %164 : vector<8x128xf32>
    %cst_47 = arith.constant 1.000000e+00 : f32
    %166 = vector.broadcast %cst_47 : f32 to vector<8x128xf32>
    %167 = arith.addf %166, %165 : vector<8x128xf32>
    %168 = arith.divf %166, %167 : vector<8x128xf32>
    %169 = arith.mulf %160, %138 : vector<8x128xf32>
    %170 = arith.mulf %154, %162 : vector<8x128xf32>
    %171 = arith.addf %169, %170 : vector<8x128xf32>
    %172 = math.tanh %171 : vector<8x128xf32>
    %173 = arith.mulf %168, %172 : vector<8x128xf32>
    %c5_i32 = arith.constant 5 : i32
    %c8_i32_48 = arith.constant 8 : i32
    %174 = arith.muli %c5_i32, %c8_i32_48 : i32
    %175 = tpu.assume_multiple %174, 8 : i32
    %176 = arith.index_cast %175 : i32 to index
    %c0_49 = arith.constant 0 : index
    %177 = vector.load %arg6[%176, %c0_49] : memref<64x1024xf32, #tpu.memory_space<vmem>>, vector<8x512xf32>
    %178 = arith.truncf %173 : vector<8x128xf32> to vector<8x128xbf16>
    %c0_50 = arith.constant 0 : index
    %c0_51 = arith.constant 0 : index
    %179 = vector.load %arg2[%c0_50, %c0_51] : memref<128x512xbf16, #tpu.memory_space<vmem>>, vector<128x512xbf16>
    %cst_52 = arith.constant dense<0.000000e+00> : vector<8x512xf32>
    %180 = tpu.matmul %178, %179, %cst_52 {dimension_numbers = #tpu.dot_dimension_numbers<[1], [0], [0], [1], [0, 0, 1, 1], [], []>} : vector<8x128xbf16>, vector<128x512xbf16>, vector<8x512xf32> -> vector<8x512xf32>
    %181 = arith.addf %177, %180 : vector<8x512xf32>
    %182 = vector.extract_strided_slice %181 {offsets = [0, 0], sizes = [8, 128], strides = [1, 1]} : vector<8x512xf32> to vector<8x128xf32>
    %183 = arith.negf %182 : vector<8x128xf32>
    %184 = math.exp %183 : vector<8x128xf32>
    %cst_53 = arith.constant 1.000000e+00 : f32
    %185 = vector.broadcast %cst_53 : f32 to vector<8x128xf32>
    %186 = arith.addf %185, %184 : vector<8x128xf32>
    %187 = arith.divf %185, %186 : vector<8x128xf32>
    %188 = vector.extract_strided_slice %181 {offsets = [0, 128], sizes = [8, 128], strides = [1, 1]} : vector<8x512xf32> to vector<8x128xf32>
    %189 = arith.negf %188 : vector<8x128xf32>
    %190 = math.exp %189 : vector<8x128xf32>
    %cst_54 = arith.constant 1.000000e+00 : f32
    %191 = vector.broadcast %cst_54 : f32 to vector<8x128xf32>
    %192 = arith.addf %191, %190 : vector<8x128xf32>
    %193 = arith.divf %191, %192 : vector<8x128xf32>
    %194 = vector.extract_strided_slice %181 {offsets = [0, 256], sizes = [8, 128], strides = [1, 1]} : vector<8x512xf32> to vector<8x128xf32>
    %195 = math.tanh %194 : vector<8x128xf32>
    %196 = vector.extract_strided_slice %181 {offsets = [0, 384], sizes = [8, 128], strides = [1, 1]} : vector<8x512xf32> to vector<8x128xf32>
    %197 = arith.negf %196 : vector<8x128xf32>
    %198 = math.exp %197 : vector<8x128xf32>
    %cst_55 = arith.constant 1.000000e+00 : f32
    %199 = vector.broadcast %cst_55 : f32 to vector<8x128xf32>
    %200 = arith.addf %199, %198 : vector<8x128xf32>
    %201 = arith.divf %199, %200 : vector<8x128xf32>
    %202 = arith.mulf %193, %171 : vector<8x128xf32>
    %203 = arith.mulf %187, %195 : vector<8x128xf32>
    %204 = arith.addf %202, %203 : vector<8x128xf32>
    %205 = math.tanh %204 : vector<8x128xf32>
    %206 = arith.mulf %201, %205 : vector<8x128xf32>
    %c6_i32 = arith.constant 6 : i32
    %c8_i32_56 = arith.constant 8 : i32
    %207 = arith.muli %c6_i32, %c8_i32_56 : i32
    %208 = tpu.assume_multiple %207, 8 : i32
    %209 = arith.index_cast %208 : i32 to index
    %c0_57 = arith.constant 0 : index
    %210 = vector.load %arg6[%209, %c0_57] : memref<64x1024xf32, #tpu.memory_space<vmem>>, vector<8x512xf32>
    %211 = arith.truncf %206 : vector<8x128xf32> to vector<8x128xbf16>
    %c0_58 = arith.constant 0 : index
    %c0_59 = arith.constant 0 : index
    %212 = vector.load %arg2[%c0_58, %c0_59] : memref<128x512xbf16, #tpu.memory_space<vmem>>, vector<128x512xbf16>
    %cst_60 = arith.constant dense<0.000000e+00> : vector<8x512xf32>
    %213 = tpu.matmul %211, %212, %cst_60 {dimension_numbers = #tpu.dot_dimension_numbers<[1], [0], [0], [1], [0, 0, 1, 1], [], []>} : vector<8x128xbf16>, vector<128x512xbf16>, vector<8x512xf32> -> vector<8x512xf32>
    %214 = arith.addf %210, %213 : vector<8x512xf32>
    %215 = vector.extract_strided_slice %214 {offsets = [0, 0], sizes = [8, 128], strides = [1, 1]} : vector<8x512xf32> to vector<8x128xf32>
    %216 = arith.negf %215 : vector<8x128xf32>
    %217 = math.exp %216 : vector<8x128xf32>
    %cst_61 = arith.constant 1.000000e+00 : f32
    %218 = vector.broadcast %cst_61 : f32 to vector<8x128xf32>
    %219 = arith.addf %218, %217 : vector<8x128xf32>
    %220 = arith.divf %218, %219 : vector<8x128xf32>
    %221 = vector.extract_strided_slice %214 {offsets = [0, 128], sizes = [8, 128], strides = [1, 1]} : vector<8x512xf32> to vector<8x128xf32>
    %222 = arith.negf %221 : vector<8x128xf32>
    %223 = math.exp %222 : vector<8x128xf32>
    %cst_62 = arith.constant 1.000000e+00 : f32
    %224 = vector.broadcast %cst_62 : f32 to vector<8x128xf32>
    %225 = arith.addf %224, %223 : vector<8x128xf32>
    %226 = arith.divf %224, %225 : vector<8x128xf32>
    %227 = vector.extract_strided_slice %214 {offsets = [0, 256], sizes = [8, 128], strides = [1, 1]} : vector<8x512xf32> to vector<8x128xf32>
    %228 = math.tanh %227 : vector<8x128xf32>
    %229 = vector.extract_strided_slice %214 {offsets = [0, 384], sizes = [8, 128], strides = [1, 1]} : vector<8x512xf32> to vector<8x128xf32>
    %230 = arith.negf %229 : vector<8x128xf32>
    %231 = math.exp %230 : vector<8x128xf32>
    %cst_63 = arith.constant 1.000000e+00 : f32
    %232 = vector.broadcast %cst_63 : f32 to vector<8x128xf32>
    %233 = arith.addf %232, %231 : vector<8x128xf32>
    %234 = arith.divf %232, %233 : vector<8x128xf32>
    %235 = arith.mulf %226, %204 : vector<8x128xf32>
    %236 = arith.mulf %220, %228 : vector<8x128xf32>
    %237 = arith.addf %235, %236 : vector<8x128xf32>
    %238 = math.tanh %237 : vector<8x128xf32>
    %239 = arith.mulf %234, %238 : vector<8x128xf32>
    %c7_i32 = arith.constant 7 : i32
    %c8_i32_64 = arith.constant 8 : i32
    %240 = arith.muli %c7_i32, %c8_i32_64 : i32
    %241 = tpu.assume_multiple %240, 8 : i32
    %242 = arith.index_cast %241 : i32 to index
    %c0_65 = arith.constant 0 : index
    %243 = vector.load %arg6[%242, %c0_65] : memref<64x1024xf32, #tpu.memory_space<vmem>>, vector<8x512xf32>
    %244 = arith.truncf %239 : vector<8x128xf32> to vector<8x128xbf16>
    %c0_66 = arith.constant 0 : index
    %c0_67 = arith.constant 0 : index
    %245 = vector.load %arg2[%c0_66, %c0_67] : memref<128x512xbf16, #tpu.memory_space<vmem>>, vector<128x512xbf16>
    %cst_68 = arith.constant dense<0.000000e+00> : vector<8x512xf32>
    %246 = tpu.matmul %244, %245, %cst_68 {dimension_numbers = #tpu.dot_dimension_numbers<[1], [0], [0], [1], [0, 0, 1, 1], [], []>} : vector<8x128xbf16>, vector<128x512xbf16>, vector<8x512xf32> -> vector<8x512xf32>
    %247 = arith.addf %243, %246 : vector<8x512xf32>
    %248 = vector.extract_strided_slice %247 {offsets = [0, 0], sizes = [8, 128], strides = [1, 1]} : vector<8x512xf32> to vector<8x128xf32>
    %249 = arith.negf %248 : vector<8x128xf32>
    %250 = math.exp %249 : vector<8x128xf32>
    %cst_69 = arith.constant 1.000000e+00 : f32
    %251 = vector.broadcast %cst_69 : f32 to vector<8x128xf32>
    %252 = arith.addf %251, %250 : vector<8x128xf32>
    %253 = arith.divf %251, %252 : vector<8x128xf32>
    %254 = vector.extract_strided_slice %247 {offsets = [0, 128], sizes = [8, 128], strides = [1, 1]} : vector<8x512xf32> to vector<8x128xf32>
    %255 = arith.negf %254 : vector<8x128xf32>
    %256 = math.exp %255 : vector<8x128xf32>
    %cst_70 = arith.constant 1.000000e+00 : f32
    %257 = vector.broadcast %cst_70 : f32 to vector<8x128xf32>
    %258 = arith.addf %257, %256 : vector<8x128xf32>
    %259 = arith.divf %257, %258 : vector<8x128xf32>
    %260 = vector.extract_strided_slice %247 {offsets = [0, 256], sizes = [8, 128], strides = [1, 1]} : vector<8x512xf32> to vector<8x128xf32>
    %261 = math.tanh %260 : vector<8x128xf32>
    %262 = vector.extract_strided_slice %247 {offsets = [0, 384], sizes = [8, 128], strides = [1, 1]} : vector<8x512xf32> to vector<8x128xf32>
    %263 = arith.negf %262 : vector<8x128xf32>
    %264 = math.exp %263 : vector<8x128xf32>
    %cst_71 = arith.constant 1.000000e+00 : f32
    %265 = vector.broadcast %cst_71 : f32 to vector<8x128xf32>
    %266 = arith.addf %265, %264 : vector<8x128xf32>
    %267 = arith.divf %265, %266 : vector<8x128xf32>
    %268 = arith.mulf %259, %237 : vector<8x128xf32>
    %269 = arith.mulf %253, %261 : vector<8x128xf32>
    %270 = arith.addf %268, %269 : vector<8x128xf32>
    %271 = math.tanh %270 : vector<8x128xf32>
    %272 = arith.mulf %267, %271 : vector<8x128xf32>
    %c8_i32_72 = arith.constant 8 : i32
    %c56 = arith.constant 56 : index
    %c512 = arith.constant 512 : index
    %273 = vector.load %arg6[%c56, %c512] : memref<64x1024xf32, #tpu.memory_space<vmem>>, vector<8x512xf32>
    %cst_73 = arith.constant 0.000000e+00 : f32
    %274 = vector.broadcast %cst_73 : f32 to vector<8x128xf32>
    %275 = vector.extract_strided_slice %273 {offsets = [0, 0], sizes = [8, 128], strides = [1, 1]} : vector<8x512xf32> to vector<8x128xf32>
    %276 = arith.negf %275 : vector<8x128xf32>
    %277 = math.exp %276 : vector<8x128xf32>
    %cst_74 = arith.constant 1.000000e+00 : f32
    %278 = vector.broadcast %cst_74 : f32 to vector<8x128xf32>
    %279 = arith.addf %278, %277 : vector<8x128xf32>
    %280 = arith.divf %278, %279 : vector<8x128xf32>
    %281 = vector.extract_strided_slice %273 {offsets = [0, 128], sizes = [8, 128], strides = [1, 1]} : vector<8x512xf32> to vector<8x128xf32>
    %282 = arith.negf %281 : vector<8x128xf32>
    %283 = math.exp %282 : vector<8x128xf32>
    %cst_75 = arith.constant 1.000000e+00 : f32
    %284 = vector.broadcast %cst_75 : f32 to vector<8x128xf32>
    %285 = arith.addf %284, %283 : vector<8x128xf32>
    %286 = arith.divf %284, %285 : vector<8x128xf32>
    %287 = vector.extract_strided_slice %273 {offsets = [0, 256], sizes = [8, 128], strides = [1, 1]} : vector<8x512xf32> to vector<8x128xf32>
    %288 = math.tanh %287 : vector<8x128xf32>
    %289 = vector.extract_strided_slice %273 {offsets = [0, 384], sizes = [8, 128], strides = [1, 1]} : vector<8x512xf32> to vector<8x128xf32>
    %290 = arith.negf %289 : vector<8x128xf32>
    %291 = math.exp %290 : vector<8x128xf32>
    %cst_76 = arith.constant 1.000000e+00 : f32
    %292 = vector.broadcast %cst_76 : f32 to vector<8x128xf32>
    %293 = arith.addf %292, %291 : vector<8x128xf32>
    %294 = arith.divf %292, %293 : vector<8x128xf32>
    %295 = arith.mulf %286, %274 : vector<8x128xf32>
    %296 = arith.mulf %280, %288 : vector<8x128xf32>
    %297 = arith.addf %295, %296 : vector<8x128xf32>
    %298 = math.tanh %297 : vector<8x128xf32>
    %299 = arith.mulf %294, %298 : vector<8x128xf32>
    %300 = arith.truncf %272 : vector<8x128xf32> to vector<8x128xbf16>
    %c0_77 = arith.constant 0 : index
    %c0_78 = arith.constant 0 : index
    %301 = vector.load %arg3[%c0_77, %c0_78] : memref<256x5xbf16, #tpu.memory_space<vmem>>, vector<128x5xbf16>
    %cst_79 = arith.constant dense<0.000000e+00> : vector<8x5xf32>
    %302 = tpu.matmul %300, %301, %cst_79 {dimension_numbers = #tpu.dot_dimension_numbers<[1], [0], [0], [1], [0, 0, 1, 1], [], []>} : vector<8x128xbf16>, vector<128x5xbf16>, vector<8x5xf32> -> vector<8x5xf32>
    %303 = arith.truncf %299 : vector<8x128xf32> to vector<8x128xbf16>
    %c128 = arith.constant 128 : index
    %c0_80 = arith.constant 0 : index
    %304 = vector.load %arg3[%c128, %c0_80] : memref<256x5xbf16, #tpu.memory_space<vmem>>, vector<128x5xbf16>
    %cst_81 = arith.constant dense<0.000000e+00> : vector<8x5xf32>
    %305 = tpu.matmul %303, %304, %cst_81 {dimension_numbers = #tpu.dot_dimension_numbers<[1], [0], [0], [1], [0, 0, 1, 1], [], []>} : vector<8x128xbf16>, vector<128x5xbf16>, vector<8x5xf32> -> vector<8x5xf32>
    %306 = arith.addf %302, %305 : vector<8x5xf32>
    %c1 = arith.constant 1 : index
    %c0_82 = arith.constant 0 : index
    %307 = vector.load %arg4[%c1, %c0_82] : memref<2x1024xf32, #tpu.memory_space<vmem>>, vector<1x5xf32>
    %308 = vector.broadcast %307 : vector<1x5xf32> to vector<8x5xf32>
    %309 = arith.addf %306, %308 : vector<8x5xf32>
    %cst_83 = arith.constant dense<0xFF800000> : vector<8xf32>
    %310 = vector.multi_reduction <maximumf>, %309, %cst_83 [1] : vector<8x5xf32> to vector<8xf32>
    %311 = vector.shape_cast %310 : vector<8xf32> to vector<8x1xf32>
    %312 = vector.broadcast %311 : vector<8x1xf32> to vector<8x5xf32>
    %313 = arith.subf %309, %312 : vector<8x5xf32>
    %314 = math.exp %313 : vector<8x5xf32>
    %cst_84 = arith.constant dense<0.000000e+00> : vector<8xf32>
    %315 = vector.multi_reduction <add>, %314, %cst_84 [1] : vector<8x5xf32> to vector<8xf32>
    %316 = vector.shape_cast %315 : vector<8xf32> to vector<8x1xf32>
    %317 = math.log %316 : vector<8x1xf32>
    %318 = arith.addf %311, %317 : vector<8x1xf32>
    %319 = vector.broadcast %318 : vector<8x1xf32> to vector<8x5xf32>
    %320 = arith.subf %309, %319 : vector<8x5xf32>
    %321 = vector.extract_strided_slice %320 {offsets = [0, 0], sizes = [2, 5], strides = [1, 1]} : vector<8x5xf32> to vector<2x5xf32>
    %c0_85 = arith.constant 0 : index
    %c0_86 = arith.constant 0 : index
    %322 = vector.load %arg5[%c0_85, %c0_86] : memref<2x5xf32, #tpu.memory_space<vmem>>, vector<2x5xf32>
    tpu.vector_store %arg5[%c0_85, %c0_86], %321 {strides = array<i32>} : memref<2x5xf32, #tpu.memory_space<vmem>>, vector<2x5xf32>,
    return
  }
}

</mosaic_0001>

<llo_original>
// kernel: bilstm_sentiment_forward.1
$region0: #{bilstm_sentiment_forward.1}
  #allocation0 [shape = 'u32[]', space=smem, size = 0x4, offset = 0x4, fixed_abs, tag = 'smem constant byte address 0x4 - core index']
  #allocation1 [shape = 'u32[72,128]{1,0:T(1,128)}', space=vmem, size = 0x9000, scoped, tag = 'internal scratch']
  #allocation2 [shape = 'f32[64,1024]{1,0:T(8,128)}', space=vmem, size = 0x40000, scoped, tag = 'scratch operand']
  %s0 = inlined_call_operand.vmem [shape: bf16[64,16], index: 0, kind: input, shape index: {}]
  %s1 = inlined_call_operand.vmem [shape: bf16[16,1024], index: 1, kind: input, shape index: {}]
  %s2 = inlined_call_operand.hbm [shape: bf16[128,512], index: 2, kind: input, shape index: {}]
  %s3 = inlined_call_operand.vmem [shape: bf16[256,5], index: 3, kind: input, shape index: {}]
  %s4 = inlined_call_operand.vmem [shape: f32[2,1024], index: 4, kind: input, shape index: {}]
  %s5 = inlined_call_operand.hbm [shape: f32[2,5], index: 5, kind: output, shape index: {}]
  %s6 = sld [smem:[#allocation0]]
  $region34: #{bilstm_sentiment_forward.1} parent=0
    _
  %s8 = ssub.s32 1, %s6
  %s9 = scalar_select 0, %s8, %s6
  $region1: #{bilstm_sentiment_forward.1} parent=0
    #allocation3 [shape = 'u8[131072]{0}', space=vmem, size = 0x20000, scoped, tag = 'input window, operand 2, single buffered']
    #allocation4 [shape = 's32[1]{0}', space=sflag, size = 0x4, scoped, tag = 'scoped memory for bilstm_sentiment_forward.1']
    #allocation5 [shape = 's32[1]{0}', space=sflag, size = 0x4, scoped, tag = 'scoped memory for bilstm_sentiment_forward.1']
    #allocation6 [shape = 'u8[1024]{0}', space=vmem, size = 0x400, scoped, tag = 'output window, operand 0, single buffered']
    %10 = vsyncpa [#allocation4], 0
    %11 = vsyncpa [#allocation5], 0
    // Predicated region
    $region2: #{bilstm_sentiment_forward.1} parent=1 // pred_check
      _
    $region3: #{bilstm_sentiment_forward.1} parent=1 // pred_check_branch
      %13 = sbr.rel (0) target = $region5
    $region4: #{bilstm_sentiment_forward.1} parent=1 // pred_region
      _
    $region5: #{bilstm_sentiment_forward.1} parent=1 // pred_fallthru
      _
    // Predicated region
    $region6: #{bilstm_sentiment_forward.1} parent=1 // pred_check
      _
    $region7: #{bilstm_sentiment_forward.1} parent=1 // pred_check_branch
      %15 = sbr.rel (0) target = $region9
    $region8: #{bilstm_sentiment_forward.1} parent=1 // pred_region
      _
    $region9: #{bilstm_sentiment_forward.1} parent=1 // pred_fallthru
      _
    // Predicated region
    $region10: #{bilstm_sentiment_forward.1} parent=1 // pred_check
      _
    $region11: #{bilstm_sentiment_forward.1} parent=1 // pred_check_branch
      %17 = sbr.rel (0) target = $region13
    $region12: #{bilstm_sentiment_forward.1} parent=1 // pred_region
      %19 = vsyncadd [#allocation4], 0
      %s20 = sshll.u32 %s2, 4
      %s21 = int_to_ptr.hbm [resolvable:$true] %s20
      %s22 = sshll.u32 [#allocation3], 4
      %s23 = int_to_ptr.vmem [resolvable:$true] %s22
      %28 = dma.hbm_to_vmem [thread:$0]  %s21, 4096, %s23, [#allocation4], 256, 256, 16
    $region13: #{bilstm_sentiment_forward.1} parent=1 // pred_fallthru
      _
    // Predicated region
    $region14: #{bilstm_sentiment_forward.1} parent=1 // pred_check
      _
    $region15: #{bilstm_sentiment_forward.1} parent=1 // pred_check_branch
      %30 = sbr.rel (0) target = $region17
    $region16: #{bilstm_sentiment_forward.1} parent=1 // pred_region
      _
    $region17: #{bilstm_sentiment_forward.1} parent=1 // pred_fallthru
      _
    // Predicated region
    $region18: #{bilstm_sentiment_forward.1} parent=1 // pred_check
      _
    $region19: #{bilstm_sentiment_forward.1} parent=1 // pred_check_branch
      %32 = sbr.rel (0) target = $region21
    $region20: #{bilstm_sentiment_forward.1} parent=1 // pred_region
      _
    $region21: #{bilstm_sentiment_forward.1} parent=1 // pred_fallthru
      _
    // Predicated region
    $region22: #{bilstm_sentiment_forward.1} parent=1 // pred_check
      _
    $region23: #{bilstm_sentiment_forward.1} parent=1 // pred_check_branch
      %34 = sbr.rel (0) target = $region25
    $region24: #{bilstm_sentiment_forward.1} parent=1 // pred_region
      %36 = dma.done [#allocation4], 4096
    $region25: #{bilstm_sentiment_forward.1} parent=1 // pred_fallthru
      _
    %v38 = vld [vmem:[%s0] sm:$0xf]
    %v39 = vld [vmem:[%s0 + $0x4] sm:$0xf]
    %v40 = vld [vmem:[%s0 + $0x8] sm:$0xf]
    %v41 = vld [vmem:[%s0 + $0xc] sm:$0xf]
    %v42 = vld [vmem:[%s0 + $0x10] sm:$0xf]
    %v43 = vld [vmem:[%s0 + $0x14] sm:$0xf]
    %v44 = vld [vmem:[%s0 + $0x18] sm:$0xf]
    %v45 = vld [vmem:[%s0 + $0x1c] sm:$0xf]
    %v46 = vld [vmem:[%s1] sm:$0xff]
    %v47 = vld [vmem:[%s1 + $0x8] sm:$0xff]
    %v48 = vld [vmem:[%s1 + $0x10] sm:$0xff]
    %v49 = vld [vmem:[%s1 + $0x18] sm:$0xff]
    %v50 = vld [vmem:[%s1 + $0x20] sm:$0xff]
    %v51 = vld [vmem:[%s1 + $0x28] sm:$0xff]
    %v52 = vld [vmem:[%s1 + $0x30] sm:$0xff]
    %v53 = vld [vmem:[%s1 + $0x38] sm:$0xff]
    %v54 = vld [vmem:[%s4] ss:$2 sm:$0xff]
    %v56 = vperm.slane %v54, 0
    %v57 = vperm.slane %v54, 1
    %v58 = vperm.slane %v54, 2
    %v59 = vperm.slane %v54, 3
    %v60 = vperm.slane %v54, 4
    %v61 = vperm.slane %v54, 5
    %v62 = vperm.slane %v54, 6
    %v63 = vperm.slane %v54, 7
    %v80 = vunpack.c.l.b16 %v38
    %v81 = vunpack.c.l.b16 %v39
    %v82 = vunpack.c.l.b16 %v40
    %v83 = vunpack.c.l.b16 %v41
    %v84 = vunpack.c.l.b16 %v42
    %v85 = vunpack.c.l.b16 %v43
    %v86 = vunpack.c.l.b16 %v44
    %v87 = vunpack.c.l.b16 %v45
    %v88 = vpack.c.b16 %v81, %v80
    %v89 = vpack.c.b16 %v83, %v82
    %v90 = vpack.c.b16 %v85, %v84
    %v91 = vpack.c.b16 %v87, %v86
    %v100 = vunpack.c.l.b16 %v46
    %v101 = vunpack.c.h.b16 %v46
    %v102 = vunpack.c.l.b16 %v47
    %v103 = vunpack.c.h.b16 %v47
    %v104 = vunpack.c.l.b16 %v48
    %v105 = vunpack.c.h.b16 %v48
    %v106 = vunpack.c.l.b16 %v49
    %v107 = vunpack.c.h.b16 %v49
    %v108 = vunpack.c.l.b16 %v50
    %v109 = vunpack.c.h.b16 %v50
    %v110 = vunpack.c.l.b16 %v51
    %v111 = vunpack.c.h.b16 %v51
    %v112 = vunpack.c.l.b16 %v52
    %v113 = vunpack.c.h.b16 %v52
    %v114 = vunpack.c.l.b16 %v53
    %v115 = vunpack.c.h.b16 %v53
    %v116 = vpack.c.b16 %v108, %v100
    %v117 = vpack.c.b16 %v109, %v101
    %v118 = vpack.c.b16 %v110, %v102
    %v119 = vpack.c.b16 %v111, %v103
    %v120 = vpack.c.b16 %v112, %v104
    %v121 = vpack.c.b16 %v113, %v105
    %v122 = vpack.c.b16 %v114, %v106
    %v123 = vpack.c.b16 %v115, %v107
    %vm132 = vcmask 130048
    %v134 = vsel %vm132, %v88, 0
    %v137 = vsel %vm132, %v89, 0
    %v140 = vsel %vm132, %v90, 0
    %v143 = vsel %vm132, %v91, 0
    %145 = vmatpush.bf16.msra.mxu0 0
    %146 = vmatpush.bf16.msra.mxu0 0
    %147 = vmatpush.bf16.msra.mxu0 0
    %148 = vmatpush.bf16.msra.mxu0 0
    %149 = vmatpush.bf16.msra.mxu0 0
    %150 = vmatpush.bf16.msra.mxu0 0
    %151 = vmatpush.bf16.msra.mxu0 0
    %152 = vmatpush.bf16.msra.mxu0 %v116
    %153 = vmatmul.bf16.gmra.mxu0 %v134
    %v154 = vpop.f32.mrf.mxu0
    %v155 = vadd.f32 %v56, %v154
    %v156 = vpop.f32.mrf.mxu0
    %v157 = vadd.f32 %v56, %v156
    %158 = vmatmul.bf16.gmra.mxu0 %v137
    %v159 = vpop.f32.mrf.mxu0
    %v160 = vadd.f32 %v56, %v159
    %v161 = vpop.f32.mrf.mxu0
    %v162 = vadd.f32 %v56, %v161
    %163 = vmatmul.bf16.gmra.mxu0 %v140
    %v164 = vpop.f32.mrf.mxu0
    %v165 = vadd.f32 %v56, %v164
    %v166 = vpop.f32.mrf.mxu0
    %v167 = vadd.f32 %v56, %v166
    %168 = vmatmul.bf16.gmra.mxu0 %v143
    %v169 = vpop.f32.mrf.mxu0
    %v170 = vadd.f32 %v56, %v169
    %v171 = vpop.f32.mrf.mxu0
    %v172 = vadd.f32 %v56, %v171
    %173 = vdwg.mxu0
    %174 = vmatpush.bf16.msra.mxu0 0
    %175 = vmatpush.bf16.msra.mxu0 0
    %176 = vmatpush.bf16.msra.mxu0 0
    %177 = vmatpush.bf16.msra.mxu0 0
    %178 = vmatpush.bf16.msra.mxu0 0
    %179 = vmatpush.bf16.msra.mxu0 0
    %180 = vmatpush.bf16.msra.mxu0 0
    %181 = vmatpush.bf16.msra.mxu0 %v117
    %182 = vmatmul.bf16.gmra.mxu0 %v134
    %v183 = vpop.f32.mrf.mxu0
    %v184 = vadd.f32 %v57, %v183
    %v185 = vpop.f32.mrf.mxu0
    %v186 = vadd.f32 %v57, %v185
    %187 = vmatmul.bf16.gmra.mxu0 %v137
    %v188 = vpop.f32.mrf.mxu0
    %v189 = vadd.f32 %v57, %v188
    %v190 = vpop.f32.mrf.mxu0
    %v191 = vadd.f32 %v57, %v190
    %192 = vmatmul.bf16.gmra.mxu0 %v140
    %v193 = vpop.f32.mrf.mxu0
    %v194 = vadd.f32 %v57, %v193
    %v195 = vpop.f32.mrf.mxu0
    %v196 = vadd.f32 %v57, %v195
    %197 = vmatmul.bf16.gmra.mxu0 %v143
    %v198 = vpop.f32.mrf.mxu0
    %v199 = vadd.f32 %v57, %v198
    %v200 = vpop.f32.mrf.mxu0
    %v201 = vadd.f32 %v57, %v200
    %202 = vdwg.mxu0
    %203 = vmatpush.bf16.msra.mxu0 0
    %204 = vmatpush.bf16.msra.mxu0 0
    %205 = vmatpush.bf16.msra.mxu0 0
    %206 = vmatpush.bf16.msra.mxu0 0
    %207 = vmatpush.bf16.msra.mxu0 0
    %208 = vmatpush.bf16.msra.mxu0 0
    %209 = vmatpush.bf16.msra.mxu0 0
    %210 = vmatpush.bf16.msra.mxu0 %v118
    %211 = vmatmul.bf16.gmra.mxu0 %v134
    %v212 = vpop.f32.mrf.mxu0
    %v213 = vadd.f32 %v58, %v212
    %v214 = vpop.f32.mrf.mxu0
    %v215 = vadd.f32 %v58, %v214
    %216 = vmatmul.bf16.gmra.mxu0 %v137
    %v217 = vpop.f32.mrf.mxu0
    %v218 = vadd.f32 %v58, %v217
    %v219 = vpop.f32.mrf.mxu0
    %v220 = vadd.f32 %v58, %v219
    %221 = vmatmul.bf16.gmra.mxu0 %v140
    %v222 = vpop.f32.mrf.mxu0
    %v223 = vadd.f32 %v58, %v222
    %v224 = vpop.f32.mrf.mxu0
    %v225 = vadd.f32 %v58, %v224
    %226 = vmatmul.bf16.gmra.mxu0 %v143
    %v227 = vpop.f32.mrf.mxu0
    %v228 = vadd.f32 %v58, %v227
    %v229 = vpop.f32.mrf.mxu0
    %v230 = vadd.f32 %v58, %v229
    %231 = vdwg.mxu0
    %232 = vmatpush.bf16.msra.mxu0 0
    %233 = vmatpush.bf16.msra.mxu0 0
    %234 = vmatpush.bf16.msra.mxu0 0
    %235 = vmatpush.bf16.msra.mxu0 0
    %236 = vmatpush.bf16.msra.mxu0 0
    %237 = vmatpush.bf16.msra.mxu0 0
    %238 = vmatpush.bf16.msra.mxu0 0
    %239 = vmatpush.bf16.msra.mxu0 %v119
    %240 = vmatmul.bf16.gmra.mxu0 %v134
    %v241 = vpop.f32.mrf.mxu0
    %v242 = vadd.f32 %v59, %v241
    %v243 = vpop.f32.mrf.mxu0
    %v244 = vadd.f32 %v59, %v243
    %245 = vmatmul.bf16.gmra.mxu0 %v137
    %v246 = vpop.f32.mrf.mxu0
    %v247 = vadd.f32 %v59, %v246
    %v248 = vpop.f32.mrf.mxu0
    %v249 = vadd.f32 %v59, %v248
    %250 = vmatmul.bf16.gmra.mxu0 %v140
    %v251 = vpop.f32.mrf.mxu0
    %v252 = vadd.f32 %v59, %v251
    %v253 = vpop.f32.mrf.mxu0
    %v254 = vadd.f32 %v59, %v253
    %255 = vmatmul.bf16.gmra.mxu0 %v143
    %v256 = vpop.f32.mrf.mxu0
    %v257 = vadd.f32 %v59, %v256
    %v258 = vpop.f32.mrf.mxu0
    %v259 = vadd.f32 %v59, %v258
    %260 = vdwg.mxu0
    %261 = vmatpush.bf16.msra.mxu0 0
    %262 = vmatpush.bf16.msra.mxu0 0
    %263 = vmatpush.bf16.msra.mxu0 0
    %264 = vmatpush.bf16.msra.mxu0 0
    %265 = vmatpush.bf16.msra.mxu0 0
    %266 = vmatpush.bf16.msra.mxu0 0
    %267 = vmatpush.bf16.msra.mxu0 0
    %268 = vmatpush.bf16.msra.mxu0 %v120
    %269 = vmatmul.bf16.gmra.mxu0 %v134
    %v270 = vpop.f32.mrf.mxu0
    %v271 = vadd.f32 %v60, %v270
    %v272 = vpop.f32.mrf.mxu0
    %v273 = vadd.f32 %v60, %v272
    %274 = vmatmul.bf16.gmra.mxu0 %v137
    %v275 = vpop.f32.mrf.mxu0
    %v276 = vadd.f32 %v60, %v275
    %v277 = vpop.f32.mrf.mxu0
    %v278 = vadd.f32 %v60, %v277
    %279 = vmatmul.bf16.gmra.mxu0 %v140
    %v280 = vpop.f32.mrf.mxu0
    %v281 = vadd.f32 %v60, %v280
    %v282 = vpop.f32.mrf.mxu0
    %v283 = vadd.f32 %v60, %v282
    %284 = vmatmul.bf16.gmra.mxu0 %v143
    %v285 = vpop.f32.mrf.mxu0
    %v286 = vadd.f32 %v60, %v285
    %v287 = vpop.f32.mrf.mxu0
    %v288 = vadd.f32 %v60, %v287
    %289 = vdwg.mxu0
    %290 = vmatpush.bf16.msra.mxu0 0
    %291 = vmatpush.bf16.msra.mxu0 0
    %292 = vmatpush.bf16.msra.mxu0 0
    %293 = vmatpush.bf16.msra.mxu0 0
    %294 = vmatpush.bf16.msra.mxu0 0
    %295 = vmatpush.bf16.msra.mxu0 0
    %296 = vmatpush.bf16.msra.mxu0 0
    %297 = vmatpush.bf16.msra.mxu0 %v121
    %298 = vmatmul.bf16.gmra.mxu0 %v134
    %v299 = vpop.f32.mrf.mxu0
    %v300 = vadd.f32 %v61, %v299
    %v301 = vpop.f32.mrf.mxu0
    %v302 = vadd.f32 %v61, %v301
    %303 = vmatmul.bf16.gmra.mxu0 %v137
    %v304 = vpop.f32.mrf.mxu0
    %v305 = vadd.f32 %v61, %v304
    %v306 = vpop.f32.mrf.mxu0
    %v307 = vadd.f32 %v61, %v306
    %308 = vmatmul.bf16.gmra.mxu0 %v140
    %v309 = vpop.f32.mrf.mxu0
    %v310 = vadd.f32 %v61, %v309
    %v311 = vpop.f32.mrf.mxu0
    %v312 = vadd.f32 %v61, %v311
    %313 = vmatmul.bf16.gmra.mxu0 %v143
    %v314 = vpop.f32.mrf.mxu0
    %v315 = vadd.f32 %v61, %v314
    %v316 = vpop.f32.mrf.mxu0
    %v317 = vadd.f32 %v61, %v316
    %318 = vdwg.mxu0
    %319 = vmatpush.bf16.msra.mxu0 0
    %320 = vmatpush.bf16.msra.mxu0 0
    %321 = vmatpush.bf16.msra.mxu0 0
    %322 = vmatpush.bf16.msra.mxu0 0
    %323 = vmatpush.bf16.msra.mxu0 0
    %324 = vmatpush.bf16.msra.mxu0 0
    %325 = vmatpush.bf16.msra.mxu0 0
    %326 = vmatpush.bf16.msra.mxu0 %v122
    %327 = vmatmul.bf16.gmra.mxu0 %v134
    %v328 = vpop.f32.mrf.mxu0
    %v329 = vadd.f32 %v62, %v328
    %v330 = vpop.f32.mrf.mxu0
    %v331 = vadd.f32 %v62, %v330
    %332 = vmatmul.bf16.gmra.mxu0 %v137
    %v333 = vpop.f32.mrf.mxu0
    %v334 = vadd.f32 %v62, %v333
    %v335 = vpop.f32.mrf.mxu0
    %v336 = vadd.f32 %v62, %v335
    %337 = vmatmul.bf16.gmra.mxu0 %v140
    %v338 = vpop.f32.mrf.mxu0
    %v339 = vadd.f32 %v62, %v338
    %v340 = vpop.f32.mrf.mxu0
    %v341 = vadd.f32 %v62, %v340
    %342 = vmatmul.bf16.gmra.mxu0 %v143
    %v343 = vpop.f32.mrf.mxu0
    %v344 = vadd.f32 %v62, %v343
    %v345 = vpop.f32.mrf.mxu0
    %v346 = vadd.f32 %v62, %v345
    %347 = vdwg.mxu0
    %348 = vmatpush.bf16.msra.mxu0 0
    %349 = vmatpush.bf16.msra.mxu0 0
    %350 = vmatpush.bf16.msra.mxu0 0
    %351 = vmatpush.bf16.msra.mxu0 0
    %352 = vmatpush.bf16.msra.mxu0 0
    %353 = vmatpush.bf16.msra.mxu0 0
    %354 = vmatpush.bf16.msra.mxu0 0
    %355 = vmatpush.bf16.msra.mxu0 %v123
    %356 = vmatmul.bf16.gmra.mxu0 %v134
    %v357 = vpop.f32.mrf.mxu0
    %v358 = vadd.f32 %v63, %v357
    %v359 = vpop.f32.mrf.mxu0
    %v360 = vadd.f32 %v63, %v359
    %361 = vmatmul.bf16.gmra.mxu0 %v137
    %v362 = vpop.f32.mrf.mxu0
    %v363 = vadd.f32 %v63, %v362
    %v364 = vpop.f32.mrf.mxu0
    %v365 = vadd.f32 %v63, %v364
    %366 = vmatmul.bf16.gmra.mxu0 %v140
    %v367 = vpop.f32.mrf.mxu0
    %v368 = vadd.f32 %v63, %v367
    %v369 = vpop.f32.mrf.mxu0
    %v370 = vadd.f32 %v63, %v369
    %371 = vmatmul.bf16.gmra.mxu0 %v143
    %v372 = vpop.f32.mrf.mxu0
    %v373 = vadd.f32 %v63, %v372
    %v374 = vpop.f32.mrf.mxu0
    %v375 = vadd.f32 %v63, %v374
    %376 = vdwg.mxu0
    %377 = vst [vmem:[#allocation2] sm:$0xff] %v155
    %378 = vst [vmem:[#allocation2 + $0x8] sm:$0xff] %v184
    %379 = vst [vmem:[#allocation2 + $0x10] sm:$0xff] %v213
    %380 = vst [vmem:[#allocation2 + $0x18] sm:$0xff] %v242
    %381 = vst [vmem:[#allocation2 + $0x20] sm:$0xff] %v271
    %382 = vst [vmem:[#allocation2 + $0x28] sm:$0xff] %v300
    %383 = vst [vmem:[#allocation2 + $0x30] sm:$0xff] %v329
    %384 = vst [vmem:[#allocation2 + $0x38] sm:$0xff] %v358
    %385 = vst [vmem:[#allocation2 + $0x40] sm:$0xff] %v157
    %386 = vst [vmem:[#allocation2 + $0x48] sm:$0xff] %v186
    %387 = vst [vmem:[#allocation2 + $0x50] sm:$0xff] %v215
    %388 = vst [vmem:[#allocation2 + $0x58] sm:$0xff] %v244
    %389 = vst [vmem:[#allocation2 + $0x60] sm:$0xff] %v273
    %390 = vst [vmem:[#allocation2 + $0x68] sm:$0xff] %v302
    %391 = vst [vmem:[#allocation2 + $0x70] sm:$0xff] %v331
    %392 = vst [vmem:[#allocation2 + $0x78] sm:$0xff] %v360
    %393 = vst [vmem:[#allocation2 + $0x80] sm:$0xff] %v160
    %394 = vst [vmem:[#allocation2 + $0x88] sm:$0xff] %v189
    %395 = vst [vmem:[#allocation2 + $0x90] sm:$0xff] %v218
    %396 = vst [vmem:[#allocation2 + $0x98] sm:$0xff] %v247
    %397 = vst [vmem:[#allocation2 + $0xa0] sm:$0xff] %v276
    %398 = vst [vmem:[#allocation2 + $0xa8] sm:$0xff] %v305
    %399 = vst [vmem:[#allocation2 + $0xb0] sm:$0xff] %v334
    %400 = vst [vmem:[#allocation2 + $0xb8] sm:$0xff] %v363
    %401 = vst [vmem:[#allocation2 + $0xc0] sm:$0xff] %v162
    %402 = vst [vmem:[#allocation2 + $0xc8] sm:$0xff] %v191
    %403 = vst [vmem:[#allocation2 + $0xd0] sm:$0xff] %v220
    %404 = vst [vmem:[#allocation2 + $0xd8] sm:$0xff] %v249
    %405 = vst [vmem:[#allocation2 + $0xe0] sm:$0xff] %v278
    %406 = vst [vmem:[#allocation2 + $0xe8] sm:$0xff] %v307
    %407 = vst [vmem:[#allocation2 + $0xf0] sm:$0xff] %v336
    %408 = vst [vmem:[#allocation2 + $0xf8] sm:$0xff] %v365
    %409 = vst [vmem:[#allocation2 + $0x100] sm:$0xff] %v165
    %410 = vst [vmem:[#allocation2 + $0x108] sm:$0xff] %v194
    %411 = vst [vmem:[#allocation2 + $0x110] sm:$0xff] %v223
    %412 = vst [vmem:[#allocation2 + $0x118] sm:$0xff] %v252
    %413 = vst [vmem:[#allocation2 + $0x120] sm:$0xff] %v281
    %414 = vst [vmem:[#allocation2 + $0x128] sm:$0xff] %v310
    %415 = vst [vmem:[#allocation2 + $0x130] sm:$0xff] %v339
    %416 = vst [vmem:[#allocation2 + $0x138] sm:$0xff] %v368
    %417 = vst [vmem:[#allocation2 + $0x140] sm:$0xff] %v167
    %418 = vst [vmem:[#allocation2 + $0x148] sm:$0xff] %v196
    %419 = vst [vmem:[#allocation2 + $0x150] sm:$0xff] %v225
    %420 = vst [vmem:[#allocation2 + $0x158] sm:$0xff] %v254
    %421 = vst [vmem:[#allocation2 + $0x160] sm:$0xff] %v283
    %422 = vst [vmem:[#allocation2 + $0x168] sm:$0xff] %v312
    %423 = vst [vmem:[#allocation2 + $0x170] sm:$0xff] %v341
    %424 = vst [vmem:[#allocation2 + $0x178] sm:$0xff] %v370
    %425 = vst [vmem:[#allocation2 + $0x180] sm:$0xff] %v170
    %426 = vst [vmem:[#allocation2 + $0x188] sm:$0xff] %v199
    %427 = vst [vmem:[#allocation2 + $0x190] sm:$0xff] %v228
    %428 = vst [vmem:[#allocation2 + $0x198] sm:$0xff] %v257
    %429 = vst [vmem:[#allocation2 + $0x1a0] sm:$0xff] %v286
    %430 = vst [vmem:[#allocation2 + $0x1a8] sm:$0xff] %v315
    %431 = vst [vmem:[#allocation2 + $0x1b0] sm:$0xff] %v344
    %432 = vst [vmem:[#allocation2 + $0x1b8] sm:$0xff] %v373
    %433 = vst [vmem:[#allocation2 + $0x1c0] sm:$0xff] %v172
    %434 = vst [vmem:[#allocation2 + $0x1c8] sm:$0xff] %v201
    %435 = vst [vmem:[#allocation2 + $0x1d0] sm:$0xff] %v230
    %436 = vst [vmem:[#allocation2 + $0x1d8] sm:$0xff] %v259
    %437 = vst [vmem:[#allocation2 + $0x1e0] sm:$0xff] %v288
    %438 = vst [vmem:[#allocation2 + $0x1e8] sm:$0xff] %v317
    %439 = vst [vmem:[#allocation2 + $0x1f0] sm:$0xff] %v346
    %440 = vst [vmem:[#allocation2 + $0x1f8] sm:$0xff] %v375
    %s441 = smul.u32 0, 8
    %s442 = smul.addr %s441, 8
    %s443 = scalar_lea.vmem [#allocation2], %s442
    %v444 = vld [vmem:[%s443] sm:$0xff]
    %v445 = vld [vmem:[%s443 + $0x8] sm:$0xff]
    %v446 = vld [vmem:[%s443 + $0x10] sm:$0xff]
    %v447 = vld [vmem:[%s443 + $0x18] sm:$0xff]
    %v448 = vld [vmem:[#allocation3] sm:$0xff]
    %v449 = vld [vmem:[#allocation3 + $0x8] sm:$0xff]
    %v450 = vld [vmem:[#allocation3 + $0x10] sm:$0xff]
    %v451 = vld [vmem:[#allocation3 + $0x18] sm:$0xff]
    %v452 = vld [vmem:[#allocation3 + $0x20] sm:$0xff]
    %v453 = vld [vmem:[#allocation3 + $0x28] sm:$0xff]
    %v454 = vld [vmem:[#allocation3 + $0x30] sm:$0xff]
    %v455 = vld [vmem:[#allocation3 + $0x38] sm:$0xff]
    %v456 = vld [vmem:[#allocation3 + $0x40] sm:$0xff]
    %v457 = vld [vmem:[#allocation3 + $0x48] sm:$0xff]
    %v458 = vld [vmem:[#allocation3 + $0x50] sm:$0xff]
    %v459 = vld [vmem:[#allocation3 + $0x58] sm:$0xff]
    %v460 = vld [vmem:[#allocation3 + $0x60] sm:$0xff]
    %v461 = vld [vmem:[#allocation3 + $0x68] sm:$0xff]
    %v462 = vld [vmem:[#allocation3 + $0x70] sm:$0xff]
    %v463 = vld [vmem:[#allocation3 + $0x78] sm:$0xff]
    %v464 = vld [vmem:[#allocation3 + $0x80] sm:$0xff]
    %v465 = vld [vmem:[#allocation3 + $0x88] sm:$0xff]
    %v466 = vld [vmem:[#allocation3 + $0x90] sm:$0xff]
    %v467 = vld [vmem:[#allocation3 + $0x98] sm:$0xff]
    %v468 = vld [vmem:[#allocation3 + $0xa0] sm:$0xff]
    %v469 = vld [vmem:[#allocation3 + $0xa8] sm:$0xff]
    %v470 = vld [vmem:[#allocation3 + $0xb0] sm:$0xff]
    %v471 = vld [vmem:[#allocation3 + $0xb8] sm:$0xff]
    %v472 = vld [vmem:[#allocation3 + $0xc0] sm:$0xff]
    %v473 = vld [vmem:[#allocation3 + $0xc8] sm:$0xff]
    %v474 = vld [vmem:[#allocation3 + $0xd0] sm:$0xff]
    %v475 = vld [vmem:[#allocation3 + $0xd8] sm:$0xff]
    %v476 = vld [vmem:[#allocation3 + $0xe0] sm:$0xff]
    %v477 = vld [vmem:[#allocation3 + $0xe8] sm:$0xff]
    %v478 = vld [vmem:[#allocation3 + $0xf0] sm:$0xff]
    %v479 = vld [vmem:[#allocation3 + $0xf8] sm:$0xff]
    %v512 = vunpack.c.l.b16 %v448
    %v513 = vunpack.c.h.b16 %v448
    %v514 = vunpack.c.l.b16 %v449
    %v515 = vunpack.c.h.b16 %v449
    %v516 = vunpack.c.l.b16 %v450
    %v517 = vunpack.c.h.b16 %v450
    %v518 = vunpack.c.l.b16 %v451
    %v519 = vunpack.c.h.b16 %v451
    %v520 = vunpack.c.l.b16 %v452
    %v521 = vunpack.c.h.b16 %v452
    %v522 = vunpack.c.l.b16 %v453
    %v523 = vunpack.c.h.b16 %v453
    %v524 = vunpack.c.l.b16 %v454
    %v525 = vunpack.c.h.b16 %v454
    %v526 = vunpack.c.l.b16 %v455
    %v527 = vunpack.c.h.b16 %v455
    %v528 = vunpack.c.l.b16 %v456
    %v529 = vunpack.c.h.b16 %v456
    %v530 = vunpack.c.l.b16 %v457
    %v531 = vunpack.c.h.b16 %v457
    %v532 = vunpack.c.l.b16 %v458
    %v533 = vunpack.c.h.b16 %v458
    %v534 = vunpack.c.l.b16 %v459
    %v535 = vunpack.c.h.b16 %v459
    %v536 = vunpack.c.l.b16 %v460
    %v537 = vunpack.c.h.b16 %v460
    %v538 = vunpack.c.l.b16 %v461
    %v539 = vunpack.c.h.b16 %v461
    %v540 = vunpack.c.l.b16 %v462
    %v541 = vunpack.c.h.b16 %v462
    %v542 = vunpack.c.l.b16 %v463
    %v543 = vunpack.c.h.b16 %v463
    %v544 = vunpack.c.l.b16 %v464
    %v545 = vunpack.c.h.b16 %v464
    %v546 = vunpack.c.l.b16 %v465
    %v547 = vunpack.c.h.b16 %v465
    %v548 = vunpack.c.l.b16 %v466
    %v549 = vunpack.c.h.b16 %v466
    %v550 = vunpack.c.l.b16 %v467
    %v551 = vunpack.c.h.b16 %v467
    %v552 = vunpack.c.l.b16 %v468
    %v553 = vunpack.c.h.b16 %v468
    %v554 = vunpack.c.l.b16 %v469
    %v555 = vunpack.c.h.b16 %v469
    %v556 = vunpack.c.l.b16 %v470
    %v557 = vunpack.c.h.b16 %v470
    %v558 = vunpack.c.l.b16 %v471
    %v559 = vunpack.c.h.b16 %v471
    %v560 = vunpack.c.l.b16 %v472
    %v561 = vunpack.c.h.b16 %v472
    %v562 = vunpack.c.l.b16 %v473
    %v563 = vunpack.c.h.b16 %v473
    %v564 = vunpack.c.l.b16 %v474
    %v565 = vunpack.c.h.b16 %v474
    %v566 = vunpack.c.l.b16 %v475
    %v567 = vunpack.c.h.b16 %v475
    %v568 = vunpack.c.l.b16 %v476
    %v569 = vunpack.c.h.b16 %v476
    %v570 = vunpack.c.l.b16 %v477
    %v571 = vunpack.c.h.b16 %v477
    %v572 = vunpack.c.l.b16 %v478
    %v573 = vunpack.c.h.b16 %v478
    %v574 = vunpack.c.l.b16 %v479
    %v575 = vunpack.c.h.b16 %v479
    %v576 = vpack.c.b16 %v516, %v512
    %v577 = vpack.c.b16 %v517, %v513
    %v578 = vpack.c.b16 %v518, %v514
    %v579 = vpack.c.b16 %v519, %v515
    %v580 = vpack.c.b16 %v524, %v520
    %v581 = vpack.c.b16 %v525, %v521
    %v582 = vpack.c.b16 %v526, %v522
    %v583 = vpack.c.b16 %v527, %v523
    %v584 = vpack.c.b16 %v532, %v528
    %v585 = vpack.c.b16 %v533, %v529
    %v586 = vpack.c.b16 %v534, %v530
    %v587 = vpack.c.b16 %v535, %v531
    %v588 = vpack.c.b16 %v540, %v536
    %v589 = vpack.c.b16 %v541, %v537
    %v590 = vpack.c.b16 %v542, %v538
    %v591 = vpack.c.b16 %v543, %v539
    %v592 = vpack.c.b16 %v548, %v544
    %v593 = vpack.c.b16 %v549, %v545
    %v594 = vpack.c.b16 %v550, %v546
    %v595 = vpack.c.b16 %v551, %v547
    %v596 = vpack.c.b16 %v556, %v552
    %v597 = vpack.c.b16 %v557, %v553
    %v598 = vpack.c.b16 %v558, %v554
    %v599 = vpack.c.b16 %v559, %v555
    %v600 = vpack.c.b16 %v564, %v560
    %v601 = vpack.c.b16 %v565, %v561
    %v602 = vpack.c.b16 %v566, %v562
    %v603 = vpack.c.b16 %v567, %v563
    %v604 = vpack.c.b16 %v572, %v568
    %v605 = vpack.c.b16 %v573, %v569
    %v606 = vpack.c.b16 %v574, %v570
    %v607 = vpack.c.b16 %v575, %v571
    %640 = vmatpush.bf16.msra.mxu0 %v604
    %641 = vmatpush.bf16.msra.mxu0 %v600
    %642 = vmatpush.bf16.msra.mxu0 %v596
    %643 = vmatpush.bf16.msra.mxu0 %v592
    %644 = vmatpush.bf16.msra.mxu0 %v588
    %645 = vmatpush.bf16.msra.mxu0 %v584
    %646 = vmatpush.bf16.msra.mxu0 %v580
    %647 = vmatpush.bf16.msra.mxu0 %v576
    %648 = vmatmul.bf16.gmra.mxu0 0
    %v649 = vpop.f32.mrf.mxu0
    %v650 = vadd.f32 0.0, %v649
    %v651 = vpop.f32.mrf.mxu0
    %652 = vdwg.mxu0
    %653 = vmatpush.bf16.msra.mxu0 %v605
    %654 = vmatpush.bf16.msra.mxu0 %v601
    %655 = vmatpush.bf16.msra.mxu0 %v597
    %656 = vmatpush.bf16.msra.mxu0 %v593
    %657 = vmatpush.bf16.msra.mxu0 %v589
    %658 = vmatpush.bf16.msra.mxu0 %v585
    %659 = vmatpush.bf16.msra.mxu0 %v581
    %660 = vmatpush.bf16.msra.mxu0 %v577
    %661 = vmatmul.bf16.gmra.mxu0 0
    %v662 = vpop.f32.mrf.mxu0
    %v663 = vadd.f32 0.0, %v662
    %v664 = vpop.f32.mrf.mxu0
    %665 = vdwg.mxu0
    %666 = vmatpush.bf16.msra.mxu0 %v606
    %667 = vmatpush.bf16.msra.mxu0 %v602
    %668 = vmatpush.bf16.msra.mxu0 %v598
    %669 = vmatpush.bf16.msra.mxu0 %v594
    %670 = vmatpush.bf16.msra.mxu0 %v590
    %671 = vmatpush.bf16.msra.mxu0 %v586
    %672 = vmatpush.bf16.msra.mxu0 %v582
    %673 = vmatpush.bf16.msra.mxu0 %v578
    %674 = vmatmul.bf16.gmra.mxu0 0
    %v675 = vpop.f32.mrf.mxu0
    %v676 = vadd.f32 0.0, %v675
    %v677 = vpop.f32.mrf.mxu0
    %678 = vdwg.mxu0
    %679 = vmatpush.bf16.msra.mxu0 %v607
    %680 = vmatpush.bf16.msra.mxu0 %v603
    %681 = vmatpush.bf16.msra.mxu0 %v599
    %682 = vmatpush.bf16.msra.mxu0 %v595
    %683 = vmatpush.bf16.msra.mxu0 %v591
    %684 = vmatpush.bf16.msra.mxu0 %v587
    %685 = vmatpush.bf16.msra.mxu0 %v583
    %686 = vmatpush.bf16.msra.mxu0 %v579
    %687 = vmatmul.bf16.gmra.mxu0 0
    %v688 = vpop.f32.mrf.mxu0
    %v689 = vadd.f32 0.0, %v688
    %v690 = vpop.f32.mrf.mxu0
    %691 = vdwg.mxu0
    %v692 = vadd.f32 %v444, %v650
    %v693 = vadd.f32 %v445, %v663
    %v694 = vadd.f32 %v446, %v676
    %v695 = vadd.f32 %v447, %v689
    %v696 = vxor.u32 %v692, 2147483648
    %v697 = vmul.f32 %v696, 1.442695
    %v698 = vpow.pop %v697
    %v699 = vadd.f32 %v698, 1.0
    %v700 = vrcp.pop %v699
    %v701 = vmul.f32 %v699, %v700
    %v702 = vsub.f32 1.0, %v701
    %v703 = vmul.f32 %v700, %v702
    %v704 = vadd.f32 %v700, %v703
    %vm705 = vweird.f32 %v699
    %vm706 = vweird.f32 %v700
    %vm707 = vmor %vm705, %vm706
    %v708 = vsel %vm707, %v700, %v704
    %v709 = vand.u32 2147483647, %v699
    %vm710 = vcmp.eq.f32.partialorder %v709, 8.507059e+37
    %v711 = vand.u32 %v699, 2147483648
    %v712 = vor.u32 1.1754944e-38, %v711
    %v713 = vsel %vm710, %v712, %v708
    %v714 = vmul.f32 1.0, %v713
    %v715 = vxor.u32 %v693, 2147483648
    %v716 = vmul.f32 %v715, 1.442695
    %v717 = vpow.pop %v716
    %v718 = vadd.f32 %v717, 1.0
    %v719 = vrcp.pop %v718
    %v720 = vmul.f32 %v718, %v719
    %v721 = vsub.f32 1.0, %v720
    %v722 = vmul.f32 %v719, %v721
    %v723 = vadd.f32 %v719, %v722
    %vm724 = vweird.f32 %v718
    %vm725 = vweird.f32 %v719
    %vm726 = vmor %vm724, %vm725
    %v727 = vsel %vm726, %v719, %v723
    %v728 = vand.u32 2147483647, %v718
    %vm729 = vcmp.eq.f32.partialorder %v728, 8.507059e+37
    %v730 = vand.u32 %v718, 2147483648
    %v731 = vor.u32 1.1754944e-38, %v730
    %v732 = vsel %vm729, %v731, %v727
    %v733 = vmul.f32 1.0, %v732
    %v734 = vtanh.pop %v694
    %v735 = vxor.u32 %v695, 2147483648
    %v736 = vmul.f32 %v735, 1.442695
    %v737 = vpow.pop %v736
    %v738 = vadd.f32 %v737, 1.0
    %v739 = vrcp.pop %v738
    %v740 = vmul.f32 %v738, %v739
    %v741 = vsub.f32 1.0, %v740
    %v742 = vmul.f32 %v739, %v741
    %v743 = vadd.f32 %v739, %v742
    %vm744 = vweird.f32 %v738
    %vm745 = vweird.f32 %v739
    %vm746 = vmor %vm744, %vm745
    %v747 = vsel %vm746, %v739, %v743
    %v748 = vand.u32 2147483647, %v738
    %vm749 = vcmp.eq.f32.partialorder %v748, 8.507059e+37
    %v750 = vand.u32 %v738, 2147483648
    %v751 = vor.u32 1.1754944e-38, %v750
    %v752 = vsel %vm749, %v751, %v747
    %v753 = vmul.f32 1.0, %v752
    %v754 = vmul.f32 %v733, 0.0
    %v755 = vmul.f32 %v714, %v734
    %v756 = vadd.f32 %v754, %v755
    %v757 = vtanh.pop %v756
    %v758 = vmul.f32 %v753, %v757
    %s759 = smul.u32 1, 8
    %s760 = smul.addr %s759, 8
    %s761 = scalar_lea.vmem [#allocation2], %s760
    %v762 = vld [vmem:[%s761] sm:$0xff]
    %v763 = vld [vmem:[%s761 + $0x8] sm:$0xff]
    %v764 = vld [vmem:[%s761 + $0x10] sm:$0xff]
    %v765 = vld [vmem:[%s761 + $0x18] sm:$0xff]
    %v766 = vpack.c.bf16 %v758, %v758
    %767 = vmatpush.bf16.msra.mxu0 %v604
    %768 = vmatpush.bf16.msra.mxu0 %v600
    %769 = vmatpush.bf16.msra.mxu0 %v596
    %770 = vmatpush.bf16.msra.mxu0 %v592
    %771 = vmatpush.bf16.msra.mxu0 %v588
    %772 = vmatpush.bf16.msra.mxu0 %v584
    %773 = vmatpush.bf16.msra.mxu0 %v580
    %774 = vmatpush.bf16.msra.mxu0 %v576
    %775 = vmatmul.bf16.gmra.mxu0 %v766
    %v776 = vpop.f32.mrf.mxu0
    %v777 = vadd.f32 0.0, %v776
    %v778 = vpop.f32.mrf.mxu0
    %779 = vdwg.mxu0
    %780 = vmatpush.bf16.msra.mxu0 %v605
    %781 = vmatpush.bf16.msra.mxu0 %v601
    %782 = vmatpush.bf16.msra.mxu0 %v597
    %783 = vmatpush.bf16.msra.mxu0 %v593
    %784 = vmatpush.bf16.msra.mxu0 %v589
    %785 = vmatpush.bf16.msra.mxu0 %v585
    %786 = vmatpush.bf16.msra.mxu0 %v581
    %787 = vmatpush.bf16.msra.mxu0 %v577
    %788 = vmatmul.bf16.gmra.mxu0 %v766
    %v789 = vpop.f32.mrf.mxu0
    %v790 = vadd.f32 0.0, %v789
    %v791 = vpop.f32.mrf.mxu0
    %792 = vdwg.mxu0
    %793 = vmatpush.bf16.msra.mxu0 %v606
    %794 = vmatpush.bf16.msra.mxu0 %v602
    %795 = vmatpush.bf16.msra.mxu0 %v598
    %796 = vmatpush.bf16.msra.mxu0 %v594
    %797 = vmatpush.bf16.msra.mxu0 %v590
    %798 = vmatpush.bf16.msra.mxu0 %v586
    %799 = vmatpush.bf16.msra.mxu0 %v582
    %800 = vmatpush.bf16.msra.mxu0 %v578
    %801 = vmatmul.bf16.gmra.mxu0 %v766
    %v802 = vpop.f32.mrf.mxu0
    %v803 = vadd.f32 0.0, %v802
    %v804 = vpop.f32.mrf.mxu0
    %805 = vdwg.mxu0
    %806 = vmatpush.bf16.msra.mxu0 %v607
    %807 = vmatpush.bf16.msra.mxu0 %v603
    %808 = vmatpush.bf16.msra.mxu0 %v599
    %809 = vmatpush.bf16.msra.mxu0 %v595
    %810 = vmatpush.bf16.msra.mxu0 %v591
    %811 = vmatpush.bf16.msra.mxu0 %v587
    %812 = vmatpush.bf16.msra.mxu0 %v583
    %813 = vmatpush.bf16.msra.mxu0 %v579
    %814 = vmatmul.bf16.gmra.mxu0 %v766
    %v815 = vpop.f32.mrf.mxu0
    %v816 = vadd.f32 0.0, %v815
    %v817 = vpop.f32.mrf.mxu0
    %818 = vdwg.mxu0
    %v819 = vadd.f32 %v762, %v777
    %v820 = vadd.f32 %v763, %v790
    %v821 = vadd.f32 %v764, %v803
    %v822 = vadd.f32 %v765, %v816
    %v823 = vxor.u32 %v819, 2147483648
    %v824 = vmul.f32 %v823, 1.442695
    %v825 = vpow.pop %v824
    %v826 = vadd.f32 %v825, 1.0
    %v827 = vrcp.pop %v826
    %v828 = vmul.f32 %v826, %v827
    %v829 = vsub.f32 1.0, %v828
    %v830 = vmul.f32 %v827, %v829
    %v831 = vadd.f32 %v827, %v830
    %vm832 = vweird.f32 %v826
    %vm833 = vweird.f32 %v827
    %vm834 = vmor %vm832, %vm833
    %v835 = vsel %vm834, %v827, %v831
    %v836 = vand.u32 2147483647, %v826
    %vm837 = vcmp.eq.f32.partialorder %v836, 8.507059e+37
    %v838 = vand.u32 %v826, 2147483648
    %v839 = vor.u32 1.1754944e-38, %v838
    %v840 = vsel %vm837, %v839, %v835
    %v841 = vmul.f32 1.0, %v840
    %v842 = vxor.u32 %v820, 2147483648
    %v843 = vmul.f32 %v842, 1.442695
    %v844 = vpow.pop %v843
    %v845 = vadd.f32 %v844, 1.0
    %v846 = vrcp.pop %v845
    %v847 = vmul.f32 %v845, %v846
    %v848 = vsub.f32 1.0, %v847
    %v849 = vmul.f32 %v846, %v848
    %v850 = vadd.f32 %v846, %v849
    %vm851 = vweird.f32 %v845
    %vm852 = vweird.f32 %v846
    %vm853 = vmor %vm851, %vm852
    %v854 = vsel %vm853, %v846, %v850
    %v855 = vand.u32 2147483647, %v845
    %vm856 = vcmp.eq.f32.partialorder %v855, 8.507059e+37
    %v857 = vand.u32 %v845, 2147483648
    %v858 = vor.u32 1.1754944e-38, %v857
    %v859 = vsel %vm856, %v858, %v854
    %v860 = vmul.f32 1.0, %v859
    %v861 = vtanh.pop %v821
    %v862 = vxor.u32 %v822, 2147483648
    %v863 = vmul.f32 %v862, 1.442695
    %v864 = vpow.pop %v863
    %v865 = vadd.f32 %v864, 1.0
    %v866 = vrcp.pop %v865
    %v867 = vmul.f32 %v865, %v866
    %v868 = vsub.f32 1.0, %v867
    %v869 = vmul.f32 %v866, %v868
    %v870 = vadd.f32 %v866, %v869
    %vm871 = vweird.f32 %v865
    %vm872 = vweird.f32 %v866
    %vm873 = vmor %vm871, %vm872
    %v874 = vsel %vm873, %v866, %v870
    %v875 = vand.u32 2147483647, %v865
    %vm876 = vcmp.eq.f32.partialorder %v875, 8.507059e+37
    %v877 = vand.u32 %v865, 2147483648
    %v878 = vor.u32 1.1754944e-38, %v877
    %v879 = vsel %vm876, %v878, %v874
    %v880 = vmul.f32 1.0, %v879
    %v881 = vmul.f32 %v860, %v756
    %v882 = vmul.f32 %v841, %v861
    %v883 = vadd.f32 %v881, %v882
    %v884 = vtanh.pop %v883
    %v885 = vmul.f32 %v880, %v884
    %s886 = smul.u32 2, 8
    %s887 = smul.addr %s886, 8
    %s888 = scalar_lea.vmem [#allocation2], %s887
    %v889 = vld [vmem:[%s888] sm:$0xff]
    %v890 = vld [vmem:[%s888 + $0x8] sm:$0xff]
    %v891 = vld [vmem:[%s888 + $0x10] sm:$0xff]
    %v892 = vld [vmem:[%s888 + $0x18] sm:$0xff]
    %v893 = vpack.c.bf16 %v885, %v885
    %894 = vmatpush.bf16.msra.mxu0 %v604
    %895 = vmatpush.bf16.msra.mxu0 %v600
    %896 = vmatpush.bf16.msra.mxu0 %v596
    %897 = vmatpush.bf16.msra.mxu0 %v592
    %898 = vmatpush.bf16.msra.mxu0 %v588
    %899 = vmatpush.bf16.msra.mxu0 %v584
    %900 = vmatpush.bf16.msra.mxu0 %v580
    %901 = vmatpush.bf16.msra.mxu0 %v576
    %902 = vmatmul.bf16.gmra.mxu0 %v893
    %v903 = vpop.f32.mrf.mxu0
    %v904 = vadd.f32 0.0, %v903
    %v905 = vpop.f32.mrf.mxu0
    %906 = vdwg.mxu0
    %907 = vmatpush.bf16.msra.mxu0 %v605
    %908 = vmatpush.bf16.msra.mxu0 %v601
    %909 = vmatpush.bf16.msra.mxu0 %v597
    %910 = vmatpush.bf16.msra.mxu0 %v593
    %911 = vmatpush.bf16.msra.mxu0 %v589
    %912 = vmatpush.bf16.msra.mxu0 %v585
    %913 = vmatpush.bf16.msra.mxu0 %v581
    %914 = vmatpush.bf16.msra.mxu0 %v577
    %915 = vmatmul.bf16.gmra.mxu0 %v893
    %v916 = vpop.f32.mrf.mxu0
    %v917 = vadd.f32 0.0, %v916
    %v918 = vpop.f32.mrf.mxu0
    %919 = vdwg.mxu0
    %920 = vmatpush.bf16.msra.mxu0 %v606
    %921 = vmatpush.bf16.msra.mxu0 %v602
    %922 = vmatpush.bf16.msra.mxu0 %v598
    %923 = vmatpush.bf16.msra.mxu0 %v594
    %924 = vmatpush.bf16.msra.mxu0 %v590
    %925 = vmatpush.bf16.msra.mxu0 %v586
    %926 = vmatpush.bf16.msra.mxu0 %v582
    %927 = vmatpush.bf16.msra.mxu0 %v578
    %928 = vmatmul.bf16.gmra.mxu0 %v893
    %v929 = vpop.f32.mrf.mxu0
    %v930 = vadd.f32 0.0, %v929
    %v931 = vpop.f32.mrf.mxu0
    %932 = vdwg.mxu0
    %933 = vmatpush.bf16.msra.mxu0 %v607
    %934 = vmatpush.bf16.msra.mxu0 %v603
    %935 = vmatpush.bf16.msra.mxu0 %v599
    %936 = vmatpush.bf16.msra.mxu0 %v595
    %937 = vmatpush.bf16.msra.mxu0 %v591
    %938 = vmatpush.bf16.msra.mxu0 %v587
    %939 = vmatpush.bf16.msra.mxu0 %v583
    %940 = vmatpush.bf16.msra.mxu0 %v579
    %941 = vmatmul.bf16.gmra.mxu0 %v893
    %v942 = vpop.f32.mrf.mxu0
    %v943 = vadd.f32 0.0, %v942
    %v944 = vpop.f32.mrf.mxu0
    %945 = vdwg.mxu0
    %v946 = vadd.f32 %v889, %v904
    %v947 = vadd.f32 %v890, %v917
    %v948 = vadd.f32 %v891, %v930
    %v949 = vadd.f32 %v892, %v943
    %v950 = vxor.u32 %v946, 2147483648
    %v951 = vmul.f32 %v950, 1.442695
    %v952 = vpow.pop %v951
    %v953 = vadd.f32 %v952, 1.0
    %v954 = vrcp.pop %v953
    %v955 = vmul.f32 %v953, %v954
    %v956 = vsub.f32 1.0, %v955
    %v957 = vmul.f32 %v954, %v956
    %v958 = vadd.f32 %v954, %v957
    %vm959 = vweird.f32 %v953
    %vm960 = vweird.f32 %v954
    %vm961 = vmor %vm959, %vm960
    %v962 = vsel %vm961, %v954, %v958
    %v963 = vand.u32 2147483647, %v953
    %vm964 = vcmp.eq.f32.partialorder %v963, 8.507059e+37
    %v965 = vand.u32 %v953, 2147483648
    %v966 = vor.u32 1.1754944e-38, %v965
    %v967 = vsel %vm964, %v966, %v962
    %v968 = vmul.f32 1.0, %v967
    %v969 = vxor.u32 %v947, 2147483648
    %v970 = vmul.f32 %v969, 1.442695
    %v971 = vpow.pop %v970
    %v972 = vadd.f32 %v971, 1.0
    %v973 = vrcp.pop %v972
    %v974 = vmul.f32 %v972, %v973
    %v975 = vsub.f32 1.0, %v974
    %v976 = vmul.f32 %v973, %v975
    %v977 = vadd.f32 %v973, %v976
    %vm978 = vweird.f32 %v972
    %vm979 = vweird.f32 %v973
    %vm980 = vmor %vm978, %vm979
    %v981 = vsel %vm980, %v973, %v977
    %v982 = vand.u32 2147483647, %v972
    %vm983 = vcmp.eq.f32.partialorder %v982, 8.507059e+37
    %v984 = vand.u32 %v972, 2147483648
    %v985 = vor.u32 1.1754944e-38, %v984
    %v986 = vsel %vm983, %v985, %v981
    %v987 = vmul.f32 1.0, %v986
    %v988 = vtanh.pop %v948
    %v989 = vxor.u32 %v949, 2147483648
    %v990 = vmul.f32 %v989, 1.442695
    %v991 = vpow.pop %v990
    %v992 = vadd.f32 %v991, 1.0
    %v993 = vrcp.pop %v992
    %v994 = vmul.f32 %v992, %v993
    %v995 = vsub.f32 1.0, %v994
    %v996 = vmul.f32 %v993, %v995
    %v997 = vadd.f32 %v993, %v996
    %vm998 = vweird.f32 %v992
    %vm999 = vweird.f32 %v993
    %vm1000 = vmor %vm998, %vm999
    %v1001 = vsel %vm1000, %v993, %v997
    %v1002 = vand.u32 2147483647, %v992
    %vm1003 = vcmp.eq.f32.partialorder %v1002, 8.507059e+37
    %v1004 = vand.u32 %v992, 2147483648
    %v1005 = vor.u32 1.1754944e-38, %v1004
    %v1006 = vsel %vm1003, %v1005, %v1001
    %v1007 = vmul.f32 1.0, %v1006
    %v1008 = vmul.f32 %v987, %v883
    %v1009 = vmul.f32 %v968, %v988
    %v1010 = vadd.f32 %v1008, %v1009
    %v1011 = vtanh.pop %v1010
    %v1012 = vmul.f32 %v1007, %v1011
    %s1013 = smul.u32 3, 8
    %s1014 = smul.addr %s1013, 8
    %s1015 = scalar_lea.vmem [#allocation2], %s1014
    %v1016 = vld [vmem:[%s1015] sm:$0xff]
    %v1017 = vld [vmem:[%s1015 + $0x8] sm:$0xff]
    %v1018 = vld [vmem:[%s1015 + $0x10] sm:$0xff]
    %v1019 = vld [vmem:[%s1015 + $0x18] sm:$0xff]
    %v1020 = vpack.c.bf16 %v1012, %v1012
    %1021 = vmatpush.bf16.msra.mxu0 %v604
    %1022 = vmatpush.bf16.msra.mxu0 %v600
    %1023 = vmatpush.bf16.msra.mxu0 %v596
    %1024 = vmatpush.bf16.msra.mxu0 %v592
    %1025 = vmatpush.bf16.msra.mxu0 %v588
    %1026 = vmatpush.bf16.msra.mxu0 %v584
    %1027 = vmatpush.bf16.msra.mxu0 %v580
    %1028 = vmatpush.bf16.msra.mxu0 %v576
    %1029 = vmatmul.bf16.gmra.mxu0 %v1020
    %v1030 = vpop.f32.mrf.mxu0
    %v1031 = vadd.f32 0.0, %v1030
    %v1032 = vpop.f32.mrf.mxu0
    %1033 = vdwg.mxu0
    %1034 = vmatpush.bf16.msra.mxu0 %v605
    %1035 = vmatpush.bf16.msra.mxu0 %v601
    %1036 = vmatpush.bf16.msra.mxu0 %v597
    %1037 = vmatpush.bf16.msra.mxu0 %v593
    %1038 = vmatpush.bf16.msra.mxu0 %v589
    %1039 = vmatpush.bf16.msra.mxu0 %v585
    %1040 = vmatpush.bf16.msra.mxu0 %v581
    %1041 = vmatpush.bf16.msra.mxu0 %v577
    %1042 = vmatmul.bf16.gmra.mxu0 %v1020
    %v1043 = vpop.f32.mrf.mxu0
    %v1044 = vadd.f32 0.0, %v1043
    %v1045 = vpop.f32.mrf.mxu0
    %1046 = vdwg.mxu0
    %1047 = vmatpush.bf16.msra.mxu0 %v606
    %1048 = vmatpush.bf16.msra.mxu0 %v602
    %1049 = vmatpush.bf16.msra.mxu0 %v598
    %1050 = vmatpush.bf16.msra.mxu0 %v594
    %1051 = vmatpush.bf16.msra.mxu0 %v590
    %1052 = vmatpush.bf16.msra.mxu0 %v586
    %1053 = vmatpush.bf16.msra.mxu0 %v582
    %1054 = vmatpush.bf16.msra.mxu0 %v578
    %1055 = vmatmul.bf16.gmra.mxu0 %v1020
    %v1056 = vpop.f32.mrf.mxu0
    %v1057 = vadd.f32 0.0, %v1056
    %v1058 = vpop.f32.mrf.mxu0
    %1059 = vdwg.mxu0
    %1060 = vmatpush.bf16.msra.mxu0 %v607
    %1061 = vmatpush.bf16.msra.mxu0 %v603
    %1062 = vmatpush.bf16.msra.mxu0 %v599
    %1063 = vmatpush.bf16.msra.mxu0 %v595
    %1064 = vmatpush.bf16.msra.mxu0 %v591
    %1065 = vmatpush.bf16.msra.mxu0 %v587
    %1066 = vmatpush.bf16.msra.mxu0 %v583
    %1067 = vmatpush.bf16.msra.mxu0 %v579
    %1068 = vmatmul.bf16.gmra.mxu0 %v1020
    %v1069 = vpop.f32.mrf.mxu0
    %v1070 = vadd.f32 0.0, %v1069
    %v1071 = vpop.f32.mrf.mxu0
    %1072 = vdwg.mxu0
    %v1073 = vadd.f32 %v1016, %v1031
    %v1074 = vadd.f32 %v1017, %v1044
    %v1075 = vadd.f32 %v1018, %v1057
    %v1076 = vadd.f32 %v1019, %v1070
    %v1077 = vxor.u32 %v1073, 2147483648
    %v1078 = vmul.f32 %v1077, 1.442695
    %v1079 = vpow.pop %v1078
    %v1080 = vadd.f32 %v1079, 1.0
    %v1081 = vrcp.pop %v1080
    %v1082 = vmul.f32 %v1080, %v1081
    %v1083 = vsub.f32 1.0, %v1082
    %v1084 = vmul.f32 %v1081, %v1083
    %v1085 = vadd.f32 %v1081, %v1084
    %vm1086 = vweird.f32 %v1080
    %vm1087 = vweird.f32 %v1081
    %vm1088 = vmor %vm1086, %vm1087
    %v1089 = vsel %vm1088, %v1081, %v1085
    %v1090 = vand.u32 2147483647, %v1080
    %vm1091 = vcmp.eq.f32.partialorder %v1090, 8.507059e+37
    %v1092 = vand.u32 %v1080, 2147483648
    %v1093 = vor.u32 1.1754944e-38, %v1092
    %v1094 = vsel %vm1091, %v1093, %v1089
    %v1095 = vmul.f32 1.0, %v1094
    %v1096 = vxor.u32 %v1074, 2147483648
    %v1097 = vmul.f32 %v1096, 1.442695
    %v1098 = vpow.pop %v1097
    %v1099 = vadd.f32 %v1098, 1.0
    %v1100 = vrcp.pop %v1099
    %v1101 = vmul.f32 %v1099, %v1100
    %v1102 = vsub.f32 1.0, %v1101
    %v1103 = vmul.f32 %v1100, %v1102
    %v1104 = vadd.f32 %v1100, %v1103
    %vm1105 = vweird.f32 %v1099
    %vm1106 = vweird.f32 %v1100
    %vm1107 = vmor %vm1105, %vm1106
    %v1108 = vsel %vm1107, %v1100, %v1104
    %v1109 = vand.u32 2147483647, %v1099
    %vm1110 = vcmp.eq.f32.partialorder %v1109, 8.507059e+37
    %v1111 = vand.u32 %v1099, 2147483648
    %v1112 = vor.u32 1.1754944e-38, %v1111
    %v1113 = vsel %vm1110, %v1112, %v1108
    %v1114 = vmul.f32 1.0, %v1113
    %v1115 = vtanh.pop %v1075
    %v1116 = vxor.u32 %v1076, 2147483648
    %v1117 = vmul.f32 %v1116, 1.442695
    %v1118 = vpow.pop %v1117
    %v1119 = vadd.f32 %v1118, 1.0
    %v1120 = vrcp.pop %v1119
    %v1121 = vmul.f32 %v1119, %v1120
    %v1122 = vsub.f32 1.0, %v1121
    %v1123 = vmul.f32 %v1120, %v1122
    %v1124 = vadd.f32 %v1120, %v1123
    %vm1125 = vweird.f32 %v1119
    %vm1126 = vweird.f32 %v1120
    %vm1127 = vmor %vm1125, %vm1126
    %v1128 = vsel %vm1127, %v1120, %v1124
    %v1129 = vand.u32 2147483647, %v1119
    %vm1130 = vcmp.eq.f32.partialorder %v1129, 8.507059e+37
    %v1131 = vand.u32 %v1119, 2147483648
    %v1132 = vor.u32 1.1754944e-38, %v1131
    %v1133 = vsel %vm1130, %v1132, %v1128
    %v1134 = vmul.f32 1.0, %v1133
    %v1135 = vmul.f32 %v1114, %v1010
    %v1136 = vmul.f32 %v1095, %v1115
    %v1137 = vadd.f32 %v1135, %v1136
    %v1138 = vtanh.pop %v1137
    %v1139 = vmul.f32 %v1134, %v1138
    %s1140 = smul.u32 4, 8
    %s1141 = smul.addr %s1140, 8
    %s1142 = scalar_lea.vmem [#allocation2], %s1141
    %v1143 = vld [vmem:[%s1142] sm:$0xff]
    %v1144 = vld [vmem:[%s1142 + $0x8] sm:$0xff]
    %v1145 = vld [vmem:[%s1142 + $0x10] sm:$0xff]
    %v1146 = vld [vmem:[%s1142 + $0x18] sm:$0xff]
    %v1147 = vpack.c.bf16 %v1139, %v1139
    %1148 = vmatpush.bf16.msra.mxu0 %v604
    %1149 = vmatpush.bf16.msra.mxu0 %v600
    %1150 = vmatpush.bf16.msra.mxu0 %v596
    %1151 = vmatpush.bf16.msra.mxu0 %v592
    %1152 = vmatpush.bf16.msra.mxu0 %v588
    %1153 = vmatpush.bf16.msra.mxu0 %v584
    %1154 = vmatpush.bf16.msra.mxu0 %v580
    %1155 = vmatpush.bf16.msra.mxu0 %v576
    %1156 = vmatmul.bf16.gmra.mxu0 %v1147
    %v1157 = vpop.f32.mrf.mxu0
    %v1158 = vadd.f32 0.0, %v1157
    %v1159 = vpop.f32.mrf.mxu0
    %1160 = vdwg.mxu0
    %1161 = vmatpush.bf16.msra.mxu0 %v605
    %1162 = vmatpush.bf16.msra.mxu0 %v601
    %1163 = vmatpush.bf16.msra.mxu0 %v597
    %1164 = vmatpush.bf16.msra.mxu0 %v593
    %1165 = vmatpush.bf16.msra.mxu0 %v589
    %1166 = vmatpush.bf16.msra.mxu0 %v585
    %1167 = vmatpush.bf16.msra.mxu0 %v581
    %1168 = vmatpush.bf16.msra.mxu0 %v577
    %1169 = vmatmul.bf16.gmra.mxu0 %v1147
    %v1170 = vpop.f32.mrf.mxu0
    %v1171 = vadd.f32 0.0, %v1170
    %v1172 = vpop.f32.mrf.mxu0
    %1173 = vdwg.mxu0
    %1174 = vmatpush.bf16.msra.mxu0 %v606
    %1175 = vmatpush.bf16.msra.mxu0 %v602
    %1176 = vmatpush.bf16.msra.mxu0 %v598
    %1177 = vmatpush.bf16.msra.mxu0 %v594
    %1178 = vmatpush.bf16.msra.mxu0 %v590
    %1179 = vmatpush.bf16.msra.mxu0 %v586
    %1180 = vmatpush.bf16.msra.mxu0 %v582
    %1181 = vmatpush.bf16.msra.mxu0 %v578
    %1182 = vmatmul.bf16.gmra.mxu0 %v1147
    %v1183 = vpop.f32.mrf.mxu0
    %v1184 = vadd.f32 0.0, %v1183
    %v1185 = vpop.f32.mrf.mxu0
    %1186 = vdwg.mxu0
    %1187 = vmatpush.bf16.msra.mxu0 %v607
    %1188 = vmatpush.bf16.msra.mxu0 %v603
    %1189 = vmatpush.bf16.msra.mxu0 %v599
    %1190 = vmatpush.bf16.msra.mxu0 %v595
    %1191 = vmatpush.bf16.msra.mxu0 %v591
    %1192 = vmatpush.bf16.msra.mxu0 %v587
    %1193 = vmatpush.bf16.msra.mxu0 %v583
    %1194 = vmatpush.bf16.msra.mxu0 %v579
    %1195 = vmatmul.bf16.gmra.mxu0 %v1147
    %v1196 = vpop.f32.mrf.mxu0
    %v1197 = vadd.f32 0.0, %v1196
    %v1198 = vpop.f32.mrf.mxu0
    %1199 = vdwg.mxu0
    %v1200 = vadd.f32 %v1143, %v1158
    %v1201 = vadd.f32 %v1144, %v1171
    %v1202 = vadd.f32 %v1145, %v1184
    %v1203 = vadd.f32 %v1146, %v1197
    %v1204 = vxor.u32 %v1200, 2147483648
    %v1205 = vmul.f32 %v1204, 1.442695
    %v1206 = vpow.pop %v1205
    %v1207 = vadd.f32 %v1206, 1.0
    %v1208 = vrcp.pop %v1207
    %v1209 = vmul.f32 %v1207, %v1208
    %v1210 = vsub.f32 1.0, %v1209
    %v1211 = vmul.f32 %v1208, %v1210
    %v1212 = vadd.f32 %v1208, %v1211
    %vm1213 = vweird.f32 %v1207
    %vm1214 = vweird.f32 %v1208
    %vm1215 = vmor %vm1213, %vm1214
    %v1216 = vsel %vm1215, %v1208, %v1212
    %v1217 = vand.u32 2147483647, %v1207
    %vm1218 = vcmp.eq.f32.partialorder %v1217, 8.507059e+37
    %v1219 = vand.u32 %v1207, 2147483648
    %v1220 = vor.u32 1.1754944e-38, %v1219
    %v1221 = vsel %vm1218, %v1220, %v1216
    %v1222 = vmul.f32 1.0, %v1221
    %v1223 = vxor.u32 %v1201, 2147483648
    %v1224 = vmul.f32 %v1223, 1.442695
    %v1225 = vpow.pop %v1224
    %v1226 = vadd.f32 %v1225, 1.0
    %v1227 = vrcp.pop %v1226
    %v1228 = vmul.f32 %v1226, %v1227
    %v1229 = vsub.f32 1.0, %v1228
    %v1230 = vmul.f32 %v1227, %v1229
    %v1231 = vadd.f32 %v1227, %v1230
    %vm1232 = vweird.f32 %v1226
    %vm1233 = vweird.f32 %v1227
    %vm1234 = vmor %vm1232, %vm1233
    %v1235 = vsel %vm1234, %v1227, %v1231
    %v1236 = vand.u32 2147483647, %v1226
    %vm1237 = vcmp.eq.f32.partialorder %v1236, 8.507059e+37
    %v1238 = vand.u32 %v1226, 2147483648
    %v1239 = vor.u32 1.1754944e-38, %v1238
    %v1240 = vsel %vm1237, %v1239, %v1235
    %v1241 = vmul.f32 1.0, %v1240
    %v1242 = vtanh.pop %v1202
    %v1243 = vxor.u32 %v1203, 2147483648
    %v1244 = vmul.f32 %v1243, 1.442695
    %v1245 = vpow.pop %v1244
    %v1246 = vadd.f32 %v1245, 1.0
    %v1247 = vrcp.pop %v1246
    %v1248 = vmul.f32 %v1246, %v1247
    %v1249 = vsub.f32 1.0, %v1248
    %v1250 = vmul.f32 %v1247, %v1249
    %v1251 = vadd.f32 %v1247, %v1250
    %vm1252 = vweird.f32 %v1246
    %vm1253 = vweird.f32 %v1247
    %vm1254 = vmor %vm1252, %vm1253
    %v1255 = vsel %vm1254, %v1247, %v1251
    %v1256 = vand.u32 2147483647, %v1246
    %vm1257 = vcmp.eq.f32.partialorder %v1256, 8.507059e+37
    %v1258 = vand.u32 %v1246, 2147483648
    %v1259 = vor.u32 1.1754944e-38, %v1258
    %v1260 = vsel %vm1257, %v1259, %v1255
    %v1261 = vmul.f32 1.0, %v1260
    %v1262 = vmul.f32 %v1241, %v1137
    %v1263 = vmul.f32 %v1222, %v1242
    %v1264 = vadd.f32 %v1262, %v1263
    %v1265 = vtanh.pop %v1264
    %v1266 = vmul.f32 %v1261, %v1265
    %s1267 = smul.u32 5, 8
    %s1268 = smul.addr %s1267, 8
    %s1269 = scalar_lea.vmem [#allocation2], %s1268
    %v1270 = vld [vmem:[%s1269] sm:$0xff]
    %v1271 = vld [vmem:[%s1269 + $0x8] sm:$0xff]
    %v1272 = vld [vmem:[%s1269 + $0x10] sm:$0xff]
    %v1273 = vld [vmem:[%s1269 + $0x18] sm:$0xff]
    %v1274 = vpack.c.bf16 %v1266, %v1266
    %1275 = vmatpush.bf16.msra.mxu0 %v604
    %1276 = vmatpush.bf16.msra.mxu0 %v600
    %1277 = vmatpush.bf16.msra.mxu0 %v596
    %1278 = vmatpush.bf16.msra.mxu0 %v592
    %1279 = vmatpush.bf16.msra.mxu0 %v588
    %1280 = vmatpush.bf16.msra.mxu0 %v584
    %1281 = vmatpush.bf16.msra.mxu0 %v580
    %1282 = vmatpush.bf16.msra.mxu0 %v576
    %1283 = vmatmul.bf16.gmra.mxu0 %v1274
    %v1284 = vpop.f32.mrf.mxu0
    %v1285 = vadd.f32 0.0, %v1284
    %v1286 = vpop.f32.mrf.mxu0
    %1287 = vdwg.mxu0
    %1288 = vmatpush.bf16.msra.mxu0 %v605
    %1289 = vmatpush.bf16.msra.mxu0 %v601
    %1290 = vmatpush.bf16.msra.mxu0 %v597
    %1291 = vmatpush.bf16.msra.mxu0 %v593
    %1292 = vmatpush.bf16.msra.mxu0 %v589
    %1293 = vmatpush.bf16.msra.mxu0 %v585
    %1294 = vmatpush.bf16.msra.mxu0 %v581
    %1295 = vmatpush.bf16.msra.mxu0 %v577
    %1296 = vmatmul.bf16.gmra.mxu0 %v1274
    %v1297 = vpop.f32.mrf.mxu0
    %v1298 = vadd.f32 0.0, %v1297
    %v1299 = vpop.f32.mrf.mxu0
    %1300 = vdwg.mxu0
    %1301 = vmatpush.bf16.msra.mxu0 %v606
    %1302 = vmatpush.bf16.msra.mxu0 %v602
    %1303 = vmatpush.bf16.msra.mxu0 %v598
    %1304 = vmatpush.bf16.msra.mxu0 %v594
    %1305 = vmatpush.bf16.msra.mxu0 %v590
    %1306 = vmatpush.bf16.msra.mxu0 %v586
    %1307 = vmatpush.bf16.msra.mxu0 %v582
    %1308 = vmatpush.bf16.msra.mxu0 %v578
    %1309 = vmatmul.bf16.gmra.mxu0 %v1274
    %v1310 = vpop.f32.mrf.mxu0
    %v1311 = vadd.f32 0.0, %v1310
    %v1312 = vpop.f32.mrf.mxu0
    %1313 = vdwg.mxu0
    %1314 = vmatpush.bf16.msra.mxu0 %v607
    %1315 = vmatpush.bf16.msra.mxu0 %v603
    %1316 = vmatpush.bf16.msra.mxu0 %v599
    %1317 = vmatpush.bf16.msra.mxu0 %v595
    %1318 = vmatpush.bf16.msra.mxu0 %v591
    %1319 = vmatpush.bf16.msra.mxu0 %v587
    %1320 = vmatpush.bf16.msra.mxu0 %v583
    %1321 = vmatpush.bf16.msra.mxu0 %v579
    %1322 = vmatmul.bf16.gmra.mxu0 %v1274
    %v1323 = vpop.f32.mrf.mxu0
    %v1324 = vadd.f32 0.0, %v1323
    %v1325 = vpop.f32.mrf.mxu0
    %1326 = vdwg.mxu0
    %v1327 = vadd.f32 %v1270, %v1285
    %v1328 = vadd.f32 %v1271, %v1298
    %v1329 = vadd.f32 %v1272, %v1311
    %v1330 = vadd.f32 %v1273, %v1324
    %v1331 = vxor.u32 %v1327, 2147483648
    %v1332 = vmul.f32 %v1331, 1.442695
    %v1333 = vpow.pop %v1332
    %v1334 = vadd.f32 %v1333, 1.0
    %v1335 = vrcp.pop %v1334
    %v1336 = vmul.f32 %v1334, %v1335
    %v1337 = vsub.f32 1.0, %v1336
    %v1338 = vmul.f32 %v1335, %v1337
    %v1339 = vadd.f32 %v1335, %v1338
    %vm1340 = vweird.f32 %v1334
    %vm1341 = vweird.f32 %v1335
    %vm1342 = vmor %vm1340, %vm1341
    %v1343 = vsel %vm1342, %v1335, %v1339
    %v1344 = vand.u32 2147483647, %v1334
    %vm1345 = vcmp.eq.f32.partialorder %v1344, 8.507059e+37
    %v1346 = vand.u32 %v1334, 2147483648
    %v1347 = vor.u32 1.1754944e-38, %v1346
    %v1348 = vsel %vm1345, %v1347, %v1343
    %v1349 = vmul.f32 1.0, %v1348
    %v1350 = vxor.u32 %v1328, 2147483648
    %v1351 = vmul.f32 %v1350, 1.442695
    %v1352 = vpow.pop %v1351
    %v1353 = vadd.f32 %v1352, 1.0
    %v1354 = vrcp.pop %v1353
    %v1355 = vmul.f32 %v1353, %v1354
    %v1356 = vsub.f32 1.0, %v1355
    %v1357 = vmul.f32 %v1354, %v1356
    %v1358 = vadd.f32 %v1354, %v1357
    %vm1359 = vweird.f32 %v1353
    %vm1360 = vweird.f32 %v1354
    %vm1361 = vmor %vm1359, %vm1360
    %v1362 = vsel %vm1361, %v1354, %v1358
    %v1363 = vand.u32 2147483647, %v1353
    %vm1364 = vcmp.eq.f32.partialorder %v1363, 8.507059e+37
    %v1365 = vand.u32 %v1353, 2147483648
    %v1366 = vor.u32 1.1754944e-38, %v1365
    %v1367 = vsel %vm1364, %v1366, %v1362
    %v1368 = vmul.f32 1.0, %v1367
    %v1369 = vtanh.pop %v1329
    %v1370 = vxor.u32 %v1330, 2147483648
    %v1371 = vmul.f32 %v1370, 1.442695
    %v1372 = vpow.pop %v1371
    %v1373 = vadd.f32 %v1372, 1.0
    %v1374 = vrcp.pop %v1373
    %v1375 = vmul.f32 %v1373, %v1374
    %v1376 = vsub.f32 1.0, %v1375
    %v1377 = vmul.f32 %v1374, %v1376
    %v1378 = vadd.f32 %v1374, %v1377
    %vm1379 = vweird.f32 %v1373
    %vm1380 = vweird.f32 %v1374
    %vm1381 = vmor %vm1379, %vm1380
    %v1382 = vsel %vm1381, %v1374, %v1378
    %v1383 = vand.u32 2147483647, %v1373
    %vm1384 = vcmp.eq.f32.partialorder %v1383, 8.507059e+37
    %v1385 = vand.u32 %v1373, 2147483648
    %v1386 = vor.u32 1.1754944e-38, %v1385
    %v1387 = vsel %vm1384, %v1386, %v1382
    %v1388 = vmul.f32 1.0, %v1387
    %v1389 = vmul.f32 %v1368, %v1264
    %v1390 = vmul.f32 %v1349, %v1369
    %v1391 = vadd.f32 %v1389, %v1390
    %v1392 = vtanh.pop %v1391
    %v1393 = vmul.f32 %v1388, %v1392
    %s1394 = smul.u32 6, 8
    %s1395 = smul.addr %s1394, 8
    %s1396 = scalar_lea.vmem [#allocation2], %s1395
    %v1397 = vld [vmem:[%s1396] sm:$0xff]
    %v1398 = vld [vmem:[%s1396 + $0x8] sm:$0xff]
    %v1399 = vld [vmem:[%s1396 + $0x10] sm:$0xff]
    %v1400 = vld [vmem:[%s1396 + $0x18] sm:$0xff]
    %v1401 = vpack.c.bf16 %v1393, %v1393
    %1402 = vmatpush.bf16.msra.mxu0 %v604
    %1403 = vmatpush.bf16.msra.mxu0 %v600
    %1404 = vmatpush.bf16.msra.mxu0 %v596
    %1405 = vmatpush.bf16.msra.mxu0 %v592
    %1406 = vmatpush.bf16.msra.mxu0 %v588
    %1407 = vmatpush.bf16.msra.mxu0 %v584
    %1408 = vmatpush.bf16.msra.mxu0 %v580
    %1409 = vmatpush.bf16.msra.mxu0 %v576
    %1410 = vmatmul.bf16.gmra.mxu0 %v1401
    %v1411 = vpop.f32.mrf.mxu0
    %v1412 = vadd.f32 0.0, %v1411
    %v1413 = vpop.f32.mrf.mxu0
    %1414 = vdwg.mxu0
    %1415 = vmatpush.bf16.msra.mxu0 %v605
    %1416 = vmatpush.bf16.msra.mxu0 %v601
    %1417 = vmatpush.bf16.msra.mxu0 %v597
    %1418 = vmatpush.bf16.msra.mxu0 %v593
    %1419 = vmatpush.bf16.msra.mxu0 %v589
    %1420 = vmatpush.bf16.msra.mxu0 %v585
    %1421 = vmatpush.bf16.msra.mxu0 %v581
    %1422 = vmatpush.bf16.msra.mxu0 %v577
    %1423 = vmatmul.bf16.gmra.mxu0 %v1401
    %v1424 = vpop.f32.mrf.mxu0
    %v1425 = vadd.f32 0.0, %v1424
    %v1426 = vpop.f32.mrf.mxu0
    %1427 = vdwg.mxu0
    %1428 = vmatpush.bf16.msra.mxu0 %v606
    %1429 = vmatpush.bf16.msra.mxu0 %v602
    %1430 = vmatpush.bf16.msra.mxu0 %v598
    %1431 = vmatpush.bf16.msra.mxu0 %v594
    %1432 = vmatpush.bf16.msra.mxu0 %v590
    %1433 = vmatpush.bf16.msra.mxu0 %v586
    %1434 = vmatpush.bf16.msra.mxu0 %v582
    %1435 = vmatpush.bf16.msra.mxu0 %v578
    %1436 = vmatmul.bf16.gmra.mxu0 %v1401
    %v1437 = vpop.f32.mrf.mxu0
    %v1438 = vadd.f32 0.0, %v1437
    %v1439 = vpop.f32.mrf.mxu0
    %1440 = vdwg.mxu0
    %1441 = vmatpush.bf16.msra.mxu0 %v607
    %1442 = vmatpush.bf16.msra.mxu0 %v603
    %1443 = vmatpush.bf16.msra.mxu0 %v599
    %1444 = vmatpush.bf16.msra.mxu0 %v595
    %1445 = vmatpush.bf16.msra.mxu0 %v591
    %1446 = vmatpush.bf16.msra.mxu0 %v587
    %1447 = vmatpush.bf16.msra.mxu0 %v583
    %1448 = vmatpush.bf16.msra.mxu0 %v579
    %1449 = vmatmul.bf16.gmra.mxu0 %v1401
    %v1450 = vpop.f32.mrf.mxu0
    %v1451 = vadd.f32 0.0, %v1450
    %v1452 = vpop.f32.mrf.mxu0
    %1453 = vdwg.mxu0
    %v1454 = vadd.f32 %v1397, %v1412
    %v1455 = vadd.f32 %v1398, %v1425
    %v1456 = vadd.f32 %v1399, %v1438
    %v1457 = vadd.f32 %v1400, %v1451
    %v1458 = vxor.u32 %v1454, 2147483648
    %v1459 = vmul.f32 %v1458, 1.442695
    %v1460 = vpow.pop %v1459
    %v1461 = vadd.f32 %v1460, 1.0
    %v1462 = vrcp.pop %v1461
    %v1463 = vmul.f32 %v1461, %v1462
    %v1464 = vsub.f32 1.0, %v1463
    %v1465 = vmul.f32 %v1462, %v1464
    %v1466 = vadd.f32 %v1462, %v1465
    %vm1467 = vweird.f32 %v1461
    %vm1468 = vweird.f32 %v1462
    %vm1469 = vmor %vm1467, %vm1468
    %v1470 = vsel %vm1469, %v1462, %v1466
    %v1471 = vand.u32 2147483647, %v1461
    %vm1472 = vcmp.eq.f32.partialorder %v1471, 8.507059e+37
    %v1473 = vand.u32 %v1461, 2147483648
    %v1474 = vor.u32 1.1754944e-38, %v1473
    %v1475 = vsel %vm1472, %v1474, %v1470
    %v1476 = vmul.f32 1.0, %v1475
    %v1477 = vxor.u32 %v1455, 2147483648
    %v1478 = vmul.f32 %v1477, 1.442695
    %v1479 = vpow.pop %v1478
    %v1480 = vadd.f32 %v1479, 1.0
    %v1481 = vrcp.pop %v1480
    %v1482 = vmul.f32 %v1480, %v1481
    %v1483 = vsub.f32 1.0, %v1482
    %v1484 = vmul.f32 %v1481, %v1483
    %v1485 = vadd.f32 %v1481, %v1484
    %vm1486 = vweird.f32 %v1480
    %vm1487 = vweird.f32 %v1481
    %vm1488 = vmor %vm1486, %vm1487
    %v1489 = vsel %vm1488, %v1481, %v1485
    %v1490 = vand.u32 2147483647, %v1480
    %vm1491 = vcmp.eq.f32.partialorder %v1490, 8.507059e+37
    %v1492 = vand.u32 %v1480, 2147483648
    %v1493 = vor.u32 1.1754944e-38, %v1492
    %v1494 = vsel %vm1491, %v1493, %v1489
    %v1495 = vmul.f32 1.0, %v1494
    %v1496 = vtanh.pop %v1456
    %v1497 = vxor.u32 %v1457, 2147483648
    %v1498 = vmul.f32 %v1497, 1.442695
    %v1499 = vpow.pop %v1498
    %v1500 = vadd.f32 %v1499, 1.0
    %v1501 = vrcp.pop %v1500
    %v1502 = vmul.f32 %v1500, %v1501
    %v1503 = vsub.f32 1.0, %v1502
    %v1504 = vmul.f32 %v1501, %v1503
    %v1505 = vadd.f32 %v1501, %v1504
    %vm1506 = vweird.f32 %v1500
    %vm1507 = vweird.f32 %v1501
    %vm1508 = vmor %vm1506, %vm1507
    %v1509 = vsel %vm1508, %v1501, %v1505
    %v1510 = vand.u32 2147483647, %v1500
    %vm1511 = vcmp.eq.f32.partialorder %v1510, 8.507059e+37
    %v1512 = vand.u32 %v1500, 2147483648
    %v1513 = vor.u32 1.1754944e-38, %v1512
    %v1514 = vsel %vm1511, %v1513, %v1509
    %v1515 = vmul.f32 1.0, %v1514
    %v1516 = vmul.f32 %v1495, %v1391
    %v1517 = vmul.f32 %v1476, %v1496
    %v1518 = vadd.f32 %v1516, %v1517
    %v1519 = vtanh.pop %v1518
    %v1520 = vmul.f32 %v1515, %v1519
    %s1521 = smul.u32 7, 8
    %s1522 = smul.addr %s1521, 8
    %s1523 = scalar_lea.vmem [#allocation2], %s1522
    %v1524 = vld [vmem:[%s1523] sm:$0xff]
    %v1525 = vld [vmem:[%s1523 + $0x8] sm:$0xff]
    %v1526 = vld [vmem:[%s1523 + $0x10] sm:$0xff]
    %v1527 = vld [vmem:[%s1523 + $0x18] sm:$0xff]
    %v1528 = vpack.c.bf16 %v1520, %v1520
    %1529 = vmatpush.bf16.msra.mxu0 %v604
    %1530 = vmatpush.bf16.msra.mxu0 %v600
    %1531 = vmatpush.bf16.msra.mxu0 %v596
    %1532 = vmatpush.bf16.msra.mxu0 %v592
    %1533 = vmatpush.bf16.msra.mxu0 %v588
    %1534 = vmatpush.bf16.msra.mxu0 %v584
    %1535 = vmatpush.bf16.msra.mxu0 %v580
    %1536 = vmatpush.bf16.msra.mxu0 %v576
    %1537 = vmatmul.bf16.gmra.mxu0 %v1528
    %v1538 = vpop.f32.mrf.mxu0
    %v1539 = vadd.f32 0.0, %v1538
    %v1540 = vpop.f32.mrf.mxu0
    %1541 = vdwg.mxu0
    %1542 = vmatpush.bf16.msra.mxu0 %v605
    %1543 = vmatpush.bf16.msra.mxu0 %v601
    %1544 = vmatpush.bf16.msra.mxu0 %v597
    %1545 = vmatpush.bf16.msra.mxu0 %v593
    %1546 = vmatpush.bf16.msra.mxu0 %v589
    %1547 = vmatpush.bf16.msra.mxu0 %v585
    %1548 = vmatpush.bf16.msra.mxu0 %v581
    %1549 = vmatpush.bf16.msra.mxu0 %v577
    %1550 = vmatmul.bf16.gmra.mxu0 %v1528
    %v1551 = vpop.f32.mrf.mxu0
    %v1552 = vadd.f32 0.0, %v1551
    %v1553 = vpop.f32.mrf.mxu0
    %1554 = vdwg.mxu0
    %1555 = vmatpush.bf16.msra.mxu0 %v606
    %1556 = vmatpush.bf16.msra.mxu0 %v602
    %1557 = vmatpush.bf16.msra.mxu0 %v598
    %1558 = vmatpush.bf16.msra.mxu0 %v594
    %1559 = vmatpush.bf16.msra.mxu0 %v590
    %1560 = vmatpush.bf16.msra.mxu0 %v586
    %1561 = vmatpush.bf16.msra.mxu0 %v582
    %1562 = vmatpush.bf16.msra.mxu0 %v578
    %1563 = vmatmul.bf16.gmra.mxu0 %v1528
    %v1564 = vpop.f32.mrf.mxu0
    %v1565 = vadd.f32 0.0, %v1564
    %v1566 = vpop.f32.mrf.mxu0
    %1567 = vdwg.mxu0
    %1568 = vmatpush.bf16.msra.mxu0 %v607
    %1569 = vmatpush.bf16.msra.mxu0 %v603
    %1570 = vmatpush.bf16.msra.mxu0 %v599
    %1571 = vmatpush.bf16.msra.mxu0 %v595
    %1572 = vmatpush.bf16.msra.mxu0 %v591
    %1573 = vmatpush.bf16.msra.mxu0 %v587
    %1574 = vmatpush.bf16.msra.mxu0 %v583
    %1575 = vmatpush.bf16.msra.mxu0 %v579
    %1576 = vmatmul.bf16.gmra.mxu0 %v1528
    %v1577 = vpop.f32.mrf.mxu0
    %v1578 = vadd.f32 0.0, %v1577
    %v1579 = vpop.f32.mrf.mxu0
    %1580 = vdwg.mxu0
    %v1581 = vadd.f32 %v1524, %v1539
    %v1582 = vadd.f32 %v1525, %v1552
    %v1583 = vadd.f32 %v1526, %v1565
    %v1584 = vadd.f32 %v1527, %v1578
    %v1585 = vxor.u32 %v1581, 2147483648
    %v1586 = vmul.f32 %v1585, 1.442695
    %v1587 = vpow.pop %v1586
    %v1588 = vadd.f32 %v1587, 1.0
    %v1589 = vrcp.pop %v1588
    %v1590 = vmul.f32 %v1588, %v1589
    %v1591 = vsub.f32 1.0, %v1590
    %v1592 = vmul.f32 %v1589, %v1591
    %v1593 = vadd.f32 %v1589, %v1592
    %vm1594 = vweird.f32 %v1588
    %vm1595 = vweird.f32 %v1589
    %vm1596 = vmor %vm1594, %vm1595
    %v1597 = vsel %vm1596, %v1589, %v1593
    %v1598 = vand.u32 2147483647, %v1588
    %vm1599 = vcmp.eq.f32.partialorder %v1598, 8.507059e+37
    %v1600 = vand.u32 %v1588, 2147483648
    %v1601 = vor.u32 1.1754944e-38, %v1600
    %v1602 = vsel %vm1599, %v1601, %v1597
    %v1603 = vmul.f32 1.0, %v1602
    %v1604 = vxor.u32 %v1582, 2147483648
    %v1605 = vmul.f32 %v1604, 1.442695
    %v1606 = vpow.pop %v1605
    %v1607 = vadd.f32 %v1606, 1.0
    %v1608 = vrcp.pop %v1607
    %v1609 = vmul.f32 %v1607, %v1608
    %v1610 = vsub.f32 1.0, %v1609
    %v1611 = vmul.f32 %v1608, %v1610
    %v1612 = vadd.f32 %v1608, %v1611
    %vm1613 = vweird.f32 %v1607
    %vm1614 = vweird.f32 %v1608
    %vm1615 = vmor %vm1613, %vm1614
    %v1616 = vsel %vm1615, %v1608, %v1612
    %v1617 = vand.u32 2147483647, %v1607
    %vm1618 = vcmp.eq.f32.partialorder %v1617, 8.507059e+37
    %v1619 = vand.u32 %v1607, 2147483648
    %v1620 = vor.u32 1.1754944e-38, %v1619
    %v1621 = vsel %vm1618, %v1620, %v1616
    %v1622 = vmul.f32 1.0, %v1621
    %v1623 = vtanh.pop %v1583
    %v1624 = vxor.u32 %v1584, 2147483648
    %v1625 = vmul.f32 %v1624, 1.442695
    %v1626 = vpow.pop %v1625
    %v1627 = vadd.f32 %v1626, 1.0
    %v1628 = vrcp.pop %v1627
    %v1629 = vmul.f32 %v1627, %v1628
    %v1630 = vsub.f32 1.0, %v1629
    %v1631 = vmul.f32 %v1628, %v1630
    %v1632 = vadd.f32 %v1628, %v1631
    %vm1633 = vweird.f32 %v1627
    %vm1634 = vweird.f32 %v1628
    %vm1635 = vmor %vm1633, %vm1634
    %v1636 = vsel %vm1635, %v1628, %v1632
    %v1637 = vand.u32 2147483647, %v1627
    %vm1638 = vcmp.eq.f32.partialorder %v1637, 8.507059e+37
    %v1639 = vand.u32 %v1627, 2147483648
    %v1640 = vor.u32 1.1754944e-38, %v1639
    %v1641 = vsel %vm1638, %v1640, %v1636
    %v1642 = vmul.f32 1.0, %v1641
    %v1643 = vmul.f32 %v1622, %v1518
    %v1644 = vmul.f32 %v1603, %v1623
    %v1645 = vadd.f32 %v1643, %v1644
    %v1646 = vtanh.pop %v1645
    %v1647 = vmul.f32 %v1642, %v1646
    %v1648 = vld [vmem:[#allocation2 + $0x1e0] sm:$0xff]
    %v1649 = vld [vmem:[#allocation2 + $0x1e8] sm:$0xff]
    %v1650 = vld [vmem:[#allocation2 + $0x1f0] sm:$0xff]
    %v1651 = vld [vmem:[#allocation2 + $0x1f8] sm:$0xff]
    %v1652 = vxor.u32 %v1648, 2147483648
    %v1653 = vmul.f32 %v1652, 1.442695
    %v1654 = vpow.pop %v1653
    %v1655 = vadd.f32 %v1654, 1.0
    %v1656 = vrcp.pop %v1655
    %v1657 = vmul.f32 %v1655, %v1656
    %v1658 = vsub.f32 1.0, %v1657
    %v1659 = vmul.f32 %v1656, %v1658
    %v1660 = vadd.f32 %v1656, %v1659
    %vm1661 = vweird.f32 %v1655
    %vm1662 = vweird.f32 %v1656
    %vm1663 = vmor %vm1661, %vm1662
    %v1664 = vsel %vm1663, %v1656, %v1660
    %v1665 = vand.u32 2147483647, %v1655
    %vm1666 = vcmp.eq.f32.partialorder %v1665, 8.507059e+37
    %v1667 = vand.u32 %v1655, 2147483648
    %v1668 = vor.u32 1.1754944e-38, %v1667
    %v1669 = vsel %vm1666, %v1668, %v1664
    %v1670 = vmul.f32 1.0, %v1669
    %v1671 = vxor.u32 %v1649, 2147483648
    %v1672 = vmul.f32 %v1671, 1.442695
    %v1673 = vpow.pop %v1672
    %v1674 = vadd.f32 %v1673, 1.0
    %v1675 = vrcp.pop %v1674
    %v1676 = vmul.f32 %v1674, %v1675
    %v1677 = vsub.f32 1.0, %v1676
    %v1678 = vmul.f32 %v1675, %v1677
    %v1679 = vadd.f32 %v1675, %v1678
    %vm1680 = vweird.f32 %v1674
    %vm1681 = vweird.f32 %v1675
    %vm1682 = vmor %vm1680, %vm1681
    %v1683 = vsel %vm1682, %v1675, %v1679
    %v1684 = vand.u32 2147483647, %v1674
    %vm1685 = vcmp.eq.f32.partialorder %v1684, 8.507059e+37
    %v1686 = vand.u32 %v1674, 2147483648
    %v1687 = vor.u32 1.1754944e-38, %v1686
    %v1688 = vsel %vm1685, %v1687, %v1683
    %v1689 = vmul.f32 1.0, %v1688
    %v1690 = vtanh.pop %v1650
    %v1691 = vxor.u32 %v1651, 2147483648
    %v1692 = vmul.f32 %v1691, 1.442695
    %v1693 = vpow.pop %v1692
    %v1694 = vadd.f32 %v1693, 1.0
    %v1695 = vrcp.pop %v1694
    %v1696 = vmul.f32 %v1694, %v1695
    %v1697 = vsub.f32 1.0, %v1696
    %v1698 = vmul.f32 %v1695, %v1697
    %v1699 = vadd.f32 %v1695, %v1698
    %vm1700 = vweird.f32 %v1694
    %vm1701 = vweird.f32 %v1695
    %vm1702 = vmor %vm1700, %vm1701
    %v1703 = vsel %vm1702, %v1695, %v1699
    %v1704 = vand.u32 2147483647, %v1694
    %vm1705 = vcmp.eq.f32.partialorder %v1704, 8.507059e+37
    %v1706 = vand.u32 %v1694, 2147483648
    %v1707 = vor.u32 1.1754944e-38, %v1706
    %v1708 = vsel %vm1705, %v1707, %v1703
    %v1709 = vmul.f32 1.0, %v1708
    %v1710 = vmul.f32 %v1689, 0.0
    %v1711 = vmul.f32 %v1670, %v1690
    %v1712 = vadd.f32 %v1710, %v1711
    %v1713 = vtanh.pop %v1712
    %v1714 = vmul.f32 %v1709, %v1713
    %v1715 = vpack.c.bf16 %v1647, %v1647
    %v1716 = vld [vmem:[%s3] sm:$0xf]
    %v1717 = vld [vmem:[%s3 + $0x4] sm:$0xf]
    %v1718 = vld [vmem:[%s3 + $0x8] sm:$0xf]
    %v1719 = vld [vmem:[%s3 + $0xc] sm:$0xf]
    %v1720 = vld [vmem:[%s3 + $0x10] sm:$0xf]
    %v1721 = vld [vmem:[%s3 + $0x14] sm:$0xf]
    %v1722 = vld [vmem:[%s3 + $0x18] sm:$0xf]
    %v1723 = vld [vmem:[%s3 + $0x1c] sm:$0xf]
    %v1724 = vld [vmem:[%s3 + $0x20] sm:$0xf]
    %v1725 = vld [vmem:[%s3 + $0x24] sm:$0xf]
    %v1726 = vld [vmem:[%s3 + $0x28] sm:$0xf]
    %v1727 = vld [vmem:[%s3 + $0x2c] sm:$0xf]
    %v1728 = vld [vmem:[%s3 + $0x30] sm:$0xf]
    %v1729 = vld [vmem:[%s3 + $0x34] sm:$0xf]
    %v1730 = vld [vmem:[%s3 + $0x38] sm:$0xf]
    %v1731 = vld [vmem:[%s3 + $0x3c] sm:$0xf]
    %v1732 = vpack.c.bf16 %v1714, %v1714
    %v1733 = vld [vmem:[%s3 + $0x40] sm:$0xf]
    %v1734 = vld [vmem:[%s3 + $0x44] sm:$0xf]
    %v1735 = vld [vmem:[%s3 + $0x48] sm:$0xf]
    %v1736 = vld [vmem:[%s3 + $0x4c] sm:$0xf]
    %v1737 = vld [vmem:[%s3 + $0x50] sm:$0xf]
    %v1738 = vld [vmem:[%s3 + $0x54] sm:$0xf]
    %v1739 = vld [vmem:[%s3 + $0x58] sm:$0xf]
    %v1740 = vld [vmem:[%s3 + $0x5c] sm:$0xf]
    %v1741 = vld [vmem:[%s3 + $0x60] sm:$0xf]
    %v1742 = vld [vmem:[%s3 + $0x64] sm:$0xf]
    %v1743 = vld [vmem:[%s3 + $0x68] sm:$0xf]
    %v1744 = vld [vmem:[%s3 + $0x6c] sm:$0xf]
    %v1745 = vld [vmem:[%s3 + $0x70] sm:$0xf]
    %v1746 = vld [vmem:[%s3 + $0x74] sm:$0xf]
    %v1747 = vld [vmem:[%s3 + $0x78] sm:$0xf]
    %v1748 = vld [vmem:[%s3 + $0x7c] sm:$0xf]
    %v1765 = vunpack.c.l.b16 %v1733
    %v1766 = vunpack.c.l.b16 %v1734
    %v1767 = vunpack.c.l.b16 %v1735
    %v1768 = vunpack.c.l.b16 %v1736
    %v1769 = vunpack.c.l.b16 %v1737
    %v1770 = vunpack.c.l.b16 %v1738
    %v1771 = vunpack.c.l.b16 %v1739
    %v1772 = vunpack.c.l.b16 %v1740
    %v1773 = vunpack.c.l.b16 %v1741
    %v1774 = vunpack.c.l.b16 %v1742
    %v1775 = vunpack.c.l.b16 %v1743
    %v1776 = vunpack.c.l.b16 %v1744
    %v1777 = vunpack.c.l.b16 %v1745
    %v1778 = vunpack.c.l.b16 %v1746
    %v1779 = vunpack.c.l.b16 %v1747
    %v1780 = vunpack.c.l.b16 %v1748
    %v1781 = vpack.c.b16 %v1766, %v1765
    %v1782 = vpack.c.b16 %v1768, %v1767
    %v1783 = vpack.c.b16 %v1770, %v1769
    %v1784 = vpack.c.b16 %v1772, %v1771
    %v1785 = vpack.c.b16 %v1774, %v1773
    %v1786 = vpack.c.b16 %v1776, %v1775
    %v1787 = vpack.c.b16 %v1778, %v1777
    %v1788 = vpack.c.b16 %v1780, %v1779
    %1797 = vmatpush.bf16.msra.mxu0 %v1788
    %1798 = vmatpush.bf16.msra.mxu0 %v1787
    %1799 = vmatpush.bf16.msra.mxu0 %v1786
    %1800 = vmatpush.bf16.msra.mxu0 %v1785
    %1801 = vmatpush.bf16.msra.mxu0 %v1784
    %1802 = vmatpush.bf16.msra.mxu0 %v1783
    %1803 = vmatpush.bf16.msra.mxu0 %v1782
    %1804 = vmatpush.bf16.msra.mxu0 %v1781
    %1805 = vmatmul.bf16.gmra.mxu0 %v1732
    %v1806 = vpop.f32.mrf.mxu0
    %v1807 = vadd.f32 0.0, %v1806
    %v1808 = vpop.f32.mrf.mxu0
    %1809 = vdwg.mxu0
    %v1826 = vunpack.c.l.b16 %v1716
    %v1827 = vunpack.c.l.b16 %v1717
    %v1828 = vunpack.c.l.b16 %v1718
    %v1829 = vunpack.c.l.b16 %v1719
    %v1830 = vunpack.c.l.b16 %v1720
    %v1831 = vunpack.c.l.b16 %v1721
    %v1832 = vunpack.c.l.b16 %v1722
    %v1833 = vunpack.c.l.b16 %v1723
    %v1834 = vunpack.c.l.b16 %v1724
    %v1835 = vunpack.c.l.b16 %v1725
    %v1836 = vunpack.c.l.b16 %v1726
    %v1837 = vunpack.c.l.b16 %v1727
    %v1838 = vunpack.c.l.b16 %v1728
    %v1839 = vunpack.c.l.b16 %v1729
    %v1840 = vunpack.c.l.b16 %v1730
    %v1841 = vunpack.c.l.b16 %v1731
    %v1842 = vpack.c.b16 %v1827, %v1826
    %v1843 = vpack.c.b16 %v1829, %v1828
    %v1844 = vpack.c.b16 %v1831, %v1830
    %v1845 = vpack.c.b16 %v1833, %v1832
    %v1846 = vpack.c.b16 %v1835, %v1834
    %v1847 = vpack.c.b16 %v1837, %v1836
    %v1848 = vpack.c.b16 %v1839, %v1838
    %v1849 = vpack.c.b16 %v1841, %v1840
    %1858 = vmatpush.bf16.msra.mxu0 %v1849
    %1859 = vmatpush.bf16.msra.mxu0 %v1848
    %1860 = vmatpush.bf16.msra.mxu0 %v1847
    %1861 = vmatpush.bf16.msra.mxu0 %v1846
    %1862 = vmatpush.bf16.msra.mxu0 %v1845
    %1863 = vmatpush.bf16.msra.mxu0 %v1844
    %1864 = vmatpush.bf16.msra.mxu0 %v1843
    %1865 = vmatpush.bf16.msra.mxu0 %v1842
    %1866 = vmatmul.bf16.gmra.mxu0 %v1715
    %v1867 = vpop.f32.mrf.mxu0
    %v1868 = vadd.f32 %v1807, %v1867
    %v1869 = vpop.f32.mrf.mxu0
    %1870 = vdwg.mxu0
    %v1871 = vld [vmem:[%s4 + $0x1] sm:$0x1]
    %v1872 = vperm.slane %v1871, 0
    %v1873 = vadd.f32 %v1868, %v1872
    %vm1874 = vcmask 39936
    %v1875 = vsel %vm1874, %v1873, -inf
    %1876 = vmax.xlane.f32.xlu0 %v1875
    %v1877 = vpop.xlane.xlu0 %1876
    %v1878 = vsub.f32 %v1873, %v1877
    %v1879 = vmul.f32 %v1878, 1.442695
    %v1880 = vpow.pop %v1879
    %v1881 = vsel %vm1874, %v1880, 0.0
    %1882 = vadd.xlane.f32.xlu0 %v1881
    %v1883 = vpop.xlane.xlu0 %1882
    %v1884 = vlog2.pop %v1883
    %v1885 = vmul.f32 %v1884, 0.6931472
    %v1886 = vadd.f32 %v1877, %v1885
    %v1887 = vsub.f32 %v1873, %v1886
    %vm1888 = vcmask 33792
    %1889 = vst.msk [vmem:[#allocation6] sm:$0x3] %vm1888, %v1887
    // Predicated region
    $region26: #{bilstm_sentiment_forward.1} parent=1 // pred_check
      _
    $region27: #{bilstm_sentiment_forward.1} parent=1 // pred_check_branch
      %1891 = sbr.rel (0) target = $region29
    $region28: #{bilstm_sentiment_forward.1} parent=1 // pred_region
      %1893 = vsyncadd [#allocation5], 0
      %s1895 = sshll.u32 [#allocation6], 4
      %s1896 = int_to_ptr.vmem [resolvable:$true] %s1895
      %s1897 = sshll.u32 %s5, 4
      %s1898 = int_to_ptr.hbm [resolvable:$true] %s1897
      %1900 = dma.vmem_to_hbm [thread:$0]  %s1896, 32, %s1898, [#allocation5]
    $region29: #{bilstm_sentiment_forward.1} parent=1 // pred_fallthru
      _
    // Predicated region
    $region30: #{bilstm_sentiment_forward.1} parent=1 // pred_check
      _
    $region31: #{bilstm_sentiment_forward.1} parent=1 // pred_check_branch
      %1902 = sbr.rel (0) target = $region33
    $region32: #{bilstm_sentiment_forward.1} parent=1 // pred_region
      %1904 = dma.done [#allocation5], 32
    $region33: #{bilstm_sentiment_forward.1} parent=1 // pred_fallthru
      _
    %1905 = vsyncpa [#allocation4], 1
    %1906 = vsyncpa [#allocation5], 1

</llo_original>
